<compile_context>
chip_gen: v5e
topology: v5e:2x2
jax: 0.10.0
libtpu: 0.0.40
codegen_flags: <defaults>
</compile_context>

<pallas_src>
import math

import jax
import jax.numpy as jnp
from jax import lax
from jax.experimental import pallas as pl
from jax.experimental.pallas import tpu as pltpu

_LN_EPS = 1e-5  # nn.LayerNorm default


def _layernorm_relu(h, gamma, beta):
    """Single-pass LN stats + ReLU. h: (tb, hidden) f32 -> (tb, hidden) bf16."""
    mean = jnp.mean(h, axis=-1, keepdims=True)
    var = jnp.maximum(jnp.mean(h * h, axis=-1, keepdims=True) - mean * mean, 0.0)
    scale = lax.rsqrt(var + _LN_EPS) * gamma            # fold gamma into inv_std
    hn = (h - mean) * scale + beta
    return jnp.maximum(hn, 0.0).astype(jnp.bfloat16)


# ---------------------------------------------------------------------------
# Fused path: both weights VMEM-resident, batch tiles streamed.
# ---------------------------------------------------------------------------
def _projector_fused_kernel(x_ref, w1_ref, gamma_ref, beta_ref, w2_ref, o_ref):
    x = x_ref[...].astype(jnp.bfloat16)
    # h = x @ W1  (W1 pre-transposed to [model, hidden] -> plain MXU contraction).
    h = jnp.dot(x, w1_ref[...], preferred_element_type=jnp.float32)
    hn = _layernorm_relu(h, gamma_ref[...], beta_ref[...])
    # out = hn @ W2  (W2 pre-transposed to [hidden, model]).
    o_ref[...] = jnp.dot(hn, w2_ref[...],
                         preferred_element_type=jnp.float32).astype(o_ref.dtype)


# ---------------------------------------------------------------------------
# Fallback path (large hidden, e.g. v7x 64 MiB VMEM): W1 resident, W2 streamed
# over hidden-dim chunks with K-accumulation.  LN runs once per batch tile.
# ---------------------------------------------------------------------------
def _projector_stream_kernel(x_ref, w1_ref, gamma_ref, beta_ref, w2k_ref, o_ref,
                             hn_ref, acc_ref):
    k = pl.program_id(1)

    @pl.when(k == 0)
    def _():
        x = x_ref[...].astype(jnp.bfloat16)
        h = jnp.dot(x, w1_ref[...], preferred_element_type=jnp.float32)
        hn = _layernorm_relu(h, gamma_ref[...], beta_ref[...])
        hk = hn_ref.shape[2]
        for idx in range(hn_ref.shape[0]):  # static unroll: stash hn per hidden chunk
            hn_ref[idx] = hn[:, idx * hk:(idx + 1) * hk]
        acc_ref[...] = jnp.zeros_like(acc_ref)

    acc_ref[...] += jnp.dot(hn_ref[k], w2k_ref[...],
                            preferred_element_type=jnp.float32)

    @pl.when(k == pl.num_programs(1) - 1)
    def _():
        o_ref[...] = acc_ref[...].astype(o_ref.dtype)


# ---------------------------------------------------------------------------
# Wrapper
# ---------------------------------------------------------------------------
def _round_up(v, m):
    return ((v + m - 1) // m) * m


def _pick_hidden_chunk(hidden_dim):
    for hk in (4096, 2048, 1024, 512, 256, 128):
        if hidden_dim % hk == 0:
            return hk
    return hidden_dim  # cannot chunk cleanly -> stay fully resident


def _vmem_limit(weight_bytes, tb, model_dim, hidden_dim, x_itemsize, out_itemsize):
    io_bytes = 2 * tb * model_dim * (x_itemsize + out_itemsize)   # double-buffered x/out
    scalars = 4 * hidden_dim * 4                                  # gamma/beta (+ slack)
    interm = tb * hidden_dim * (3 * 4 + 2)                        # f32 h/temps + bf16 hn
    need = weight_bytes + io_bytes + scalars + interm
    return int(min(max(need * 1.3, 32 * 1024 * 1024), 112 * 1024 * 1024))


def projector_forward(x, w1_t, gamma, beta, w2_t, *, block_rows=256,
                      out_dtype=None, core_parallel_batch=False,
                      stream_w2_weight_bytes=40 * 1024 * 1024):
    """Fused Projector forward: out = ReLU(LayerNorm(x @ W1)) @ W2.

    x:     [B, model_dim]  (bf16 preferred; any float works)
    w1_t:  [model_dim, hidden_dim] bf16  (PyTorch w1.weight.T, transposed once)
    gamma, beta: [hidden_dim] f32        (LayerNorm affine)
    w2_t:  [hidden_dim, model_dim] bf16  (PyTorch w2.weight.T, transposed once)
    """
    B, model_dim = x.shape
    hidden_dim = w1_t.shape[1]
    assert w1_t.shape == (model_dim, hidden_dim)
    assert w2_t.shape == (hidden_dim, model_dim)
    out_dtype = x.dtype if out_dtype is None else out_dtype
    out_itemsize = jnp.dtype(out_dtype).itemsize

    # 256-row tiles feed the 256x256 MXU fully (v6e/v7x); for tiny B round up to >=32
    # rows so packed bf16 operands don't under-fill vregs / MXU passes.
    tb = block_rows if B >= block_rows else min(_round_up(B, 32), block_rows)
    num_tiles = pl.cdiv(B, tb)
    padded_b = num_tiles * tb
    x_in = x if padded_b == B else jnp.pad(x, ((0, padded_b - B), (0, 0)))

    gamma2 = gamma.reshape(1, hidden_dim).astype(jnp.float32)
    beta2 = beta.reshape(1, hidden_dim).astype(jnp.float32)

    w1_bytes = w1_t.size * w1_t.dtype.itemsize
    w2_bytes = w2_t.size * w2_t.dtype.itemsize

    cost = pl.CostEstimate(
        flops=4 * padded_b * model_dim * hidden_dim,   # two matmuls
        transcendentals=padded_b,                      # one rsqrt per row
        bytes_accessed=(x_in.size * x_in.dtype.itemsize
                        + padded_b * model_dim * out_itemsize
                        + w1_bytes + w2_bytes
                        + (gamma2.size + beta2.size) * 4),
    )

    # "parallel" is fine for v5e/v6e (single TC); flip to CORE_PARALLEL on v7x so the
    # batch tiles are actually split across its two TensorCores.
    batch_sem = pltpu.CORE_PARALLEL if core_parallel_batch else "parallel"

    hk = _pick_hidden_chunk(hidden_dim)
    use_fused = (w1_bytes + w2_bytes) <= stream_w2_weight_bytes or hk == hidden_dim

    if use_fused:
        vmem_limit = _vmem_limit(w1_bytes + w2_bytes, tb, model_dim, hidden_dim,
                                 x_in.dtype.itemsize, out_itemsize)
        out = pl.pallas_call(
            _projector_fused_kernel,
            out_shape=jax.ShapeDtypeStruct((padded_b, model_dim), out_dtype),
            grid=(num_tiles,),
            in_specs=[
                pl.BlockSpec((tb, model_dim), lambda i: (i, 0)),           # x streamed
                pl.BlockSpec((model_dim, hidden_dim), lambda i: (0, 0),
                             pipeline_mode=pl.Buffered(1)),                # W1 resident
                pl.BlockSpec((1, hidden_dim), lambda i: (0, 0),
                             pipeline_mode=pl.Buffered(1)),                # gamma
                pl.BlockSpec((1, hidden_dim), lambda i: (0, 0),
                             pipeline_mode=pl.Buffered(1)),                # beta
                pl.BlockSpec((hidden_dim, model_dim), lambda i: (0, 0),
                             pipeline_mode=pl.Buffered(1)),                # W2 resident
            ],
            out_specs=pl.BlockSpec((tb, model_dim), lambda i: (i, 0)),     # lane-dense out
            compiler_params=pltpu.CompilerParams(
                dimension_semantics=(batch_sem,),
                vmem_limit_bytes=vmem_limit,
            ),
            cost_estimate=cost,
        )(x_in, w1_t, gamma2, beta2, w2_t)
    else:
        # Large-hidden fallback (v7x 64 MiB VMEM): keep W1 resident, stream W2 over
        # hidden chunks and K-accumulate into an f32 scratch.
        nk = hidden_dim // hk
        vmem_limit = _vmem_limit(w1_bytes + 2 * hk * model_dim * 2, tb, model_dim,
                                 hidden_dim, x_in.dtype.itemsize, out_itemsize)
        out = pl.pallas_call(
            _projector_stream_kernel,
            out_shape=jax.ShapeDtypeStruct((padded_b, model_dim), out_dtype),
            grid=(num_tiles, nk),
            in_specs=[
                pl.BlockSpec((tb, model_dim), lambda i, k: (i, 0)),        # x (held per i)
                pl.BlockSpec((model_dim, hidden_dim), lambda i, k: (0, 0),
                             pipeline_mode=pl.Buffered(1)),                # W1 resident
                pl.BlockSpec((1, hidden_dim), lambda i, k: (0, 0),
                             pipeline_mode=pl.Buffered(1)),                # gamma
                pl.BlockSpec((1, hidden_dim), lambda i, k: (0, 0),
                             pipeline_mode=pl.Buffered(1)),                # beta
                pl.BlockSpec((hk, model_dim), lambda i, k: (k, 0)),        # W2 streamed
            ],
            out_specs=pl.BlockSpec((tb, model_dim), lambda i, k: (i, 0)),
            scratch_shapes=[
                pltpu.VMEM((nk, tb, hk), jnp.bfloat16),   # hn cache (per hidden chunk)
                pltpu.VMEM((tb, model_dim), jnp.float32), # f32 accumulator
            ],
            compiler_params=pltpu.CompilerParams(
                dimension_semantics=(batch_sem, "arbitrary"),
                vmem_limit_bytes=vmem_limit,
            ),
            cost_estimate=cost,
        )(x_in, w1_t, gamma2, beta2, w2_t)

    return out if padded_b == B else out[:B]


# ---------------------------------------------------------------------------
# Parameters / reference
# ---------------------------------------------------------------------------
def make_params(key, model_dim, hidden_dim):
    """Matches Projector.init(): xavier_normal_ with relu gain; LN weight=1, bias=0.
    Weights are returned PRE-TRANSPOSED (x @ W layout) in bf16 (MXU-native)."""
    k1, k2 = jax.random.split(key)
    gain = math.sqrt(2.0)  # nn.init.calculate_gain('relu')

    std1 = gain * math.sqrt(2.0 / (model_dim + hidden_dim))
    w1_t = std1 * jax.random.normal(k1, (model_dim, hidden_dim), dtype=jnp.float32)

    std2 = gain * math.sqrt(2.0 / (hidden_dim + model_dim))
    w2_t = std2 * jax.random.normal(k2, (hidden_dim, model_dim), dtype=jnp.float32)

    gamma = jnp.ones((hidden_dim,), dtype=jnp.float32)
    beta = jnp.zeros((hidden_dim,), dtype=jnp.float32)
    # TODO(synk): optional fp8 weight storage (+ per-tensor scale) for v7x.
    return w1_t.astype(jnp.bfloat16), gamma, beta, w2_t.astype(jnp.bfloat16)


def reference_forward(x, w1_t, gamma, beta, w2_t):
    """Pure-JAX reference using the same bf16 weights + f32 accumulation."""
    h = jnp.dot(x.astype(jnp.bfloat16), w1_t, preferred_element_type=jnp.float32)
    mean = jnp.mean(h, axis=-1, keepdims=True)
    var = jnp.mean((h - mean) ** 2, axis=-1, keepdims=True)
    hn = (h - mean) * lax.rsqrt(var + _LN_EPS) * gamma + beta
    hn = jnp.maximum(hn, 0.0).astype(jnp.bfloat16)
    return jnp.dot(hn, w2_t, preferred_element_type=jnp.float32).astype(x.dtype)


if __name__ == "__main__":
    # Small lane-dense demo shapes: two 256-row batch tiles exercise the pipeline.
    B = 512
    MODEL_DIM = 128
    HIDDEN_DIM = 256

    key = jax.random.PRNGKey(0)
    kx, kp = jax.random.split(key)
    # bf16 activations: cast at the producer so the kernel streams half the HBM bytes.
    x = jax.random.normal(kx, (B, MODEL_DIM), dtype=jnp.float32).astype(jnp.bfloat16)
    w1_t, gamma, beta, w2_t = make_params(kp, MODEL_DIM, HIDDEN_DIM)

    out = projector_forward(x, w1_t, gamma, beta, w2_t)
    out = jax.block_until_ready(out)

    ref = reference_forward(x, w1_t, gamma, beta, w2_t)
    assert out.shape == (B, MODEL_DIM)
    assert out.dtype == x.dtype
    out_f = out.astype(jnp.float32)
    ref_f = ref.astype(jnp.float32)
    assert jnp.allclose(out_f, ref_f, atol=6e-2, rtol=6e-2), (
        float(jnp.max(jnp.abs(out_f - ref_f)))
    )

    print("KERNEL_OK")
</pallas_src>

<mosaic_0001>
module attributes {stable_mosaic.version = 11 : i64} {
  func.func @_projector_fused_kernel(%arg0: i32, %arg1: memref<256x128xbf16, #tpu.memory_space<vmem>>, %arg2: memref<128x256xbf16, #tpu.memory_space<vmem>>, %arg3: memref<1x256xf32, #tpu.memory_space<vmem>>, %arg4: memref<1x256xf32, #tpu.memory_space<vmem>>, %arg5: memref<256x128xbf16, #tpu.memory_space<vmem>>, %arg6: memref<256x128xbf16, #tpu.memory_space<vmem>>) attributes {dimension_semantics = [#tpu.dimension_semantics<parallel>], iteration_bounds = array<i64: 2>, scalar_prefetch = 0 : i64, scratch_operands = 0 : i64, tpu.core_type = #tpu.core_type<tc>, window_params = [{transform_indices = @transform_0, window_bounds = array<i64: 256, 128>}, {pipeline_mode = #tpu.pipeline_mode<synchronous>, transform_indices = @transform_1, window_bounds = array<i64: 128, 256>}, {pipeline_mode = #tpu.pipeline_mode<synchronous>, transform_indices = @transform_2, window_bounds = array<i64: 1, 256>}, {pipeline_mode = #tpu.pipeline_mode<synchronous>, transform_indices = @transform_3, window_bounds = array<i64: 1, 256>}, {pipeline_mode = #tpu.pipeline_mode<synchronous>, transform_indices = @transform_4, window_bounds = array<i64: 256, 128>}, {transform_indices = @transform_5, window_bounds = array<i64: 256, 128>}]} {
    %c0 = arith.constant 0 : index
    %c0_0 = arith.constant 0 : index
    %0 = vector.load %arg1[%c0, %c0_0] : memref<256x128xbf16, #tpu.memory_space<vmem>>, vector<256x128xbf16>
    %c0_1 = arith.constant 0 : index
    %c0_2 = arith.constant 0 : index
    %1 = vector.load %arg2[%c0_1, %c0_2] : memref<128x256xbf16, #tpu.memory_space<vmem>>, vector<128x256xbf16>
    %cst = arith.constant dense<0.000000e+00> : vector<256x256xf32>
    %2 = tpu.matmul %0, %1, %cst {dimension_numbers = #tpu.dot_dimension_numbers<[1], [0], [0], [1], [0, 0, 1, 1], [], []>} : vector<256x128xbf16>, vector<128x256xbf16>, vector<256x256xf32> -> vector<256x256xf32>
    %c0_3 = arith.constant 0 : index
    %c0_4 = arith.constant 0 : index
    %3 = vector.load %arg3[%c0_3, %c0_4] : memref<1x256xf32, #tpu.memory_space<vmem>>, vector<1x256xf32>
    %c0_5 = arith.constant 0 : index
    %c0_6 = arith.constant 0 : index
    %4 = vector.load %arg4[%c0_5, %c0_6] : memref<1x256xf32, #tpu.memory_space<vmem>>, vector<1x256xf32>
    %cst_7 = arith.constant dense<0.000000e+00> : vector<256xf32>
    %5 = vector.multi_reduction <add>, %2, %cst_7 [1] : vector<256x256xf32> to vector<256xf32>
    %6 = vector.shape_cast %5 : vector<256xf32> to vector<256x1xf32>
    %cst_8 = arith.constant 2.560000e+02 : f32
    %7 = vector.broadcast %cst_8 : f32 to vector<256x1xf32>
    %8 = arith.divf %6, %7 : vector<256x1xf32>
    %9 = arith.mulf %2, %2 : vector<256x256xf32>
    %cst_9 = arith.constant dense<0.000000e+00> : vector<256xf32>
    %10 = vector.multi_reduction <add>, %9, %cst_9 [1] : vector<256x256xf32> to vector<256xf32>
    %11 = vector.shape_cast %10 : vector<256xf32> to vector<256x1xf32>
    %cst_10 = arith.constant 2.560000e+02 : f32
    %12 = vector.broadcast %cst_10 : f32 to vector<256x1xf32>
    %13 = arith.divf %11, %12 : vector<256x1xf32>
    %14 = arith.mulf %8, %8 : vector<256x1xf32>
    %15 = arith.subf %13, %14 : vector<256x1xf32>
    %cst_11 = arith.constant 0.000000e+00 : f32
    %16 = vector.broadcast %cst_11 : f32 to vector<256x1xf32>
    %17 = arith.maximumf %15, %16 : vector<256x1xf32>
    %cst_12 = arith.constant 9.99999974E-6 : f32
    %18 = vector.broadcast %cst_12 : f32 to vector<256x1xf32>
    %19 = arith.addf %17, %18 : vector<256x1xf32>
    %20 = math.rsqrt %19 : vector<256x1xf32>
    %21 = vector.broadcast %20 : vector<256x1xf32> to vector<256x256xf32>
    %22 = vector.broadcast %3 : vector<1x256xf32> to vector<256x256xf32>
    %23 = arith.mulf %21, %22 : vector<256x256xf32>
    %24 = vector.broadcast %8 : vector<256x1xf32> to vector<256x256xf32>
    %25 = arith.subf %2, %24 : vector<256x256xf32>
    %26 = arith.mulf %25, %23 : vector<256x256xf32>
    %27 = vector.broadcast %4 : vector<1x256xf32> to vector<256x256xf32>
    %28 = arith.addf %26, %27 : vector<256x256xf32>
    %cst_13 = arith.constant 0.000000e+00 : f32
    %29 = vector.broadcast %cst_13 : f32 to vector<256x256xf32>
    %30 = arith.maximumf %28, %29 : vector<256x256xf32>
    %31 = arith.truncf %30 : vector<256x256xf32> to vector<256x256xbf16>
    %c0_14 = arith.constant 0 : index
    %c0_15 = arith.constant 0 : index
    %32 = vector.load %arg5[%c0_14, %c0_15] : memref<256x128xbf16, #tpu.memory_space<vmem>>, vector<256x128xbf16>
    %cst_16 = arith.constant dense<0.000000e+00> : vector<256x128xf32>
    %33 = tpu.matmul %31, %32, %cst_16 {dimension_numbers = #tpu.dot_dimension_numbers<[1], [0], [0], [1], [0, 0, 1, 1], [], []>} : vector<256x256xbf16>, vector<256x128xbf16>, vector<256x128xf32> -> vector<256x128xf32>
    %34 = arith.truncf %33 : vector<256x128xf32> to vector<256x128xbf16>
    %c0_17 = arith.constant 0 : index
    %c0_18 = arith.constant 0 : index
    %35 = vector.load %arg6[%c0_17, %c0_18] : memref<256x128xbf16, #tpu.memory_space<vmem>>, vector<256x128xbf16>
    tpu.vector_store %arg6[%c0_17, %c0_18], %34 {strides = array<i32>} : memref<256x128xbf16, #tpu.memory_space<vmem>>, vector<256x128xbf16>,
    return
  }
  func.func @transform_0(%arg0: i32) -> (i32, i32) {
    %c0_i32 = arith.constant 0 : i32
    %c0_i32_0 = arith.constant 0 : i32
    return %arg0, %c0_i32 : i32, i32
  }
  func.func @transform_1(%arg0: i32) -> (i32, i32) {
    %c0_i32 = arith.constant 0 : i32
    %c0_i32_0 = arith.constant 0 : i32
    %c0_i32_1 = arith.constant 0 : i32
    return %c0_i32, %c0_i32_0 : i32, i32
  }
  func.func @transform_2(%arg0: i32) -> (i32, i32) {
    %c0_i32 = arith.constant 0 : i32
    %c0_i32_0 = arith.constant 0 : i32
    %c0_i32_1 = arith.constant 0 : i32
    return %c0_i32, %c0_i32_0 : i32, i32
  }
  func.func @transform_3(%arg0: i32) -> (i32, i32) {
    %c0_i32 = arith.constant 0 : i32
    %c0_i32_0 = arith.constant 0 : i32
    %c0_i32_1 = arith.constant 0 : i32
    return %c0_i32, %c0_i32_0 : i32, i32
  }
  func.func @transform_4(%arg0: i32) -> (i32, i32) {
    %c0_i32 = arith.constant 0 : i32
    %c0_i32_0 = arith.constant 0 : i32
    %c0_i32_1 = arith.constant 0 : i32
    return %c0_i32, %c0_i32_0 : i32, i32
  }
  func.func @transform_5(%arg0: i32) -> (i32, i32) {
    %c0_i32 = arith.constant 0 : i32
    %c0_i32_0 = arith.constant 0 : i32
    return %arg0, %c0_i32 : i32, i32
  }
}

</mosaic_0001>

<llo_original>
// kernel: tpu_custom_call.1
$region0: #{tpu_custom_call.1}
  #allocation0 [shape = 'u32[]', space=smem, size = 0x4, offset = 0x4, fixed_abs, tag = 'smem constant byte address 0x4 - core index']
  #allocation1 [shape = 'u32[72,128]{1,0:T(1,128)}', space=vmem, size = 0x9000, scoped, tag = 'internal scratch']
  %s0 = inlined_call_operand.hbm [shape: bf16[512,128], index: 0, kind: input, shape index: {}]
  %s1 = inlined_call_operand.hbm [shape: bf16[128,256], index: 1, kind: input, shape index: {}]
  %s2 = inlined_call_operand.hbm [shape: f32[1,256], index: 2, kind: input, shape index: {}]
  %s3 = inlined_call_operand.vmem [shape: f32[1,256], index: 3, kind: input, shape index: {}]
  %s4 = inlined_call_operand.hbm [shape: bf16[256,128], index: 4, kind: input, shape index: {}]
  %s5 = inlined_call_operand.hbm [shape: bf16[512,128], index: 5, kind: output, shape index: {}]
  %s6 = sld [smem:[#allocation0]]
  $region69: #{tpu_custom_call.1} parent=0
    _
  %s8 = ssub.s32 1, %s6
  %s9 = scalar_select 0, %s8, %s6
  $region1: #{tpu_custom_call.1} parent=0
    #allocation2 [shape = 'u8[131072]{0}', space=vmem, size = 0x20000, scoped, tag = 'input window, operand 0']
    #allocation3 [shape = 's32[2]{0}', space=sflag, size = 0x8, scoped, tag = 'scoped memory for tpu_custom_call.1']
    #allocation4 [shape = 's32[2]{0}', space=sflag, size = 0x8, scoped, tag = 'scoped memory for tpu_custom_call.1']
    #allocation5 [shape = 'u8[65536]{0}', space=vmem, size = 0x10000, scoped, tag = 'input window, operand 1, single buffered']
    #allocation6 [shape = 's32[1]{0}', space=sflag, size = 0x4, scoped, tag = 'scoped memory for tpu_custom_call.1']
    #allocation7 [shape = 'u8[1024]{0}', space=vmem, size = 0x400, scoped, tag = 'input window, operand 2, single buffered']
    #allocation8 [shape = 'u8[65536]{0}', space=vmem, size = 0x10000, scoped, tag = 'input window, operand 4, single buffered']
    #allocation9 [shape = 's32[1]{0}', space=sflag, size = 0x4, scoped, tag = 'scoped memory for tpu_custom_call.1']
    #allocation10 [shape = 'u8[131072]{0}', space=vmem, size = 0x20000, scoped, tag = 'output window, operand 0']
    %10 = vsyncpa [#allocation3], 0
    %s11 = scalar_lea.sflag [#allocation3], 1
    %12 = vsyncpa %s11, 0
    %13 = vsyncpa [#allocation6], 0
    %14 = vsyncpa [#allocation9], 0
    %15 = vsyncpa [#allocation4], 0
    %s16 = scalar_lea.sflag [#allocation4], 1
    %17 = vsyncpa %s16, 0
    loop: start=0, step=1, limit=4
    $region2: #{tpu_custom_call.1} parent=1 // loop_pre_header
      _
    $region3: #{tpu_custom_call.1} parent=1 // loop_header
      %s19 = sphi 0, %s23
      %p20 = scmp.ge.s32.totalorder %s19, 4
      %s29 = sphi 0, %s31
      %s32 = sphi 0, %s29
      %s33 = sphi 0, %s32
      %s49 = sphi 0, %s33
      %s53 = sphi 0, %s53
      %s55 = sphi 0, %s53
      %s56 = sphi 0, %s55
      %s70 = sphi 0, %s56
      %s74 = sphi 0, %s74
      %s76 = sphi 0, %s74
      %s77 = sphi 0, %s76
      %s91 = sphi 0, %s77
      %s95 = sphi 0, %s95
      %s97 = sphi 0, %s95
      %s98 = sphi 0, %s97
      %s112 = sphi 0, %s98
      %s116 = sphi 0, %s116
      %s118 = sphi 0, %s116
      %s119 = sphi 0, %s118
      %s133 = sphi 0, %s119
      %s139 = sphi 0, %s141
      %s142 = sphi 0, %s139
      %s143 = sphi 0, %s142
      %s159 = sphi 0, %s143
    $region4: #{tpu_custom_call.1} parent=1 // loop_header_branch
      %22 = sbr.rel (%p20) target = $region8
    $region5: #{tpu_custom_call.1} parent=1 // loop_body
      %s24 = ssub.s32 %s19, 1
      %s25 = ssub.s32 %s19, 2
      %s26 = sadd.s32 %s19, 1
      %s27 = ssub.s32 %s19, %s26
      %p28 = scmp.eq.s32.totalorder %s27, 0
      %s30 = sadd.s32 %s29, 1
      %s31 = scalar_select %p28, %s29, %s30
      %p34 = pneg %p28
      %p35 = scmp.eq.s32.totalorder %s19, 1
      %p36 = por %p34, %p35
      %p37 = scmp.ne.s32.totalorder %s29, %s32
      %p38 = scmp.eq.s32.totalorder %s19, 0
      %p39 = por %p37, %p38
      %p40 = scmp.ne.s32.totalorder %s29, %s32
      %p41 = scmp.eq.s32.totalorder %s24, 1
      %p42 = por %p40, %p41
      %p43 = scmp.ne.s32.totalorder %s32, %s33
      %p44 = scmp.eq.s32.totalorder %s24, 0
      %p45 = por %p43, %p44
      %p46 = scmp.ne.s32.totalorder %s32, %s33
      %p47 = scmp.eq.s32.totalorder %s25, 1
      %p48 = por %p46, %p47
      %p50 = scmp.ne.s32.totalorder %s33, %s49
      %p51 = scmp.eq.s32.totalorder %s25, 0
      %p52 = por %p50, %p51
      %s54 = sadd.s32 %s53, 1
      %p57 = scmp.eq.s32.totalorder %s19, 1
      %p58 = scmp.ne.s32.totalorder %s53, %s55
      %p59 = scmp.eq.s32.totalorder %s19, 0
      %p60 = por %p58, %p59
      %p61 = scmp.ne.s32.totalorder %s53, %s55
      %p62 = scmp.eq.s32.totalorder %s24, 1
      %p63 = por %p61, %p62
      %p64 = scmp.ne.s32.totalorder %s55, %s56
      %p65 = scmp.eq.s32.totalorder %s24, 0
      %p66 = por %p64, %p65
      %p67 = scmp.ne.s32.totalorder %s55, %s56
      %p68 = scmp.eq.s32.totalorder %s25, 1
      %p69 = por %p67, %p68
      %p71 = scmp.ne.s32.totalorder %s56, %s70
      %p72 = scmp.eq.s32.totalorder %s25, 0
      %p73 = por %p71, %p72
      %s75 = sadd.s32 %s74, 1
      %p78 = scmp.eq.s32.totalorder %s19, 1
      %p79 = scmp.ne.s32.totalorder %s74, %s76
      %p80 = scmp.eq.s32.totalorder %s19, 0
      %p81 = por %p79, %p80
      %p82 = scmp.ne.s32.totalorder %s74, %s76
      %p83 = scmp.eq.s32.totalorder %s24, 1
      %p84 = por %p82, %p83
      %p85 = scmp.ne.s32.totalorder %s76, %s77
      %p86 = scmp.eq.s32.totalorder %s24, 0
      %p87 = por %p85, %p86
      %p88 = scmp.ne.s32.totalorder %s76, %s77
      %p89 = scmp.eq.s32.totalorder %s25, 1
      %p90 = por %p88, %p89
      %p92 = scmp.ne.s32.totalorder %s77, %s91
      %p93 = scmp.eq.s32.totalorder %s25, 0
      %p94 = por %p92, %p93
      %s96 = sadd.s32 %s95, 1
      %p99 = scmp.eq.s32.totalorder %s19, 1
      %p100 = scmp.ne.s32.totalorder %s95, %s97
      %p101 = scmp.eq.s32.totalorder %s19, 0
      %p102 = por %p100, %p101
      %p103 = scmp.ne.s32.totalorder %s95, %s97
      %p104 = scmp.eq.s32.totalorder %s24, 1
      %p105 = por %p103, %p104
      %p106 = scmp.ne.s32.totalorder %s97, %s98
      %p107 = scmp.eq.s32.totalorder %s24, 0
      %p108 = por %p106, %p107
      %p109 = scmp.ne.s32.totalorder %s97, %s98
      %p110 = scmp.eq.s32.totalorder %s25, 1
      %p111 = por %p109, %p110
      %p113 = scmp.ne.s32.totalorder %s98, %s112
      %p114 = scmp.eq.s32.totalorder %s25, 0
      %p115 = por %p113, %p114
      %s117 = sadd.s32 %s116, 1
      %p120 = scmp.eq.s32.totalorder %s19, 1
      %p121 = scmp.ne.s32.totalorder %s116, %s118
      %p122 = scmp.eq.s32.totalorder %s19, 0
      %p123 = por %p121, %p122
      %p124 = scmp.ne.s32.totalorder %s116, %s118
      %p125 = scmp.eq.s32.totalorder %s24, 1
      %p126 = por %p124, %p125
      %p127 = scmp.ne.s32.totalorder %s118, %s119
      %p128 = scmp.eq.s32.totalorder %s24, 0
      %p129 = por %p127, %p128
      %p130 = scmp.ne.s32.totalorder %s118, %s119
      %p131 = scmp.eq.s32.totalorder %s25, 1
      %p132 = por %p130, %p131
      %p134 = scmp.ne.s32.totalorder %s119, %s133
      %p135 = scmp.eq.s32.totalorder %s25, 0
      %p136 = por %p134, %p135
      %s137 = ssub.s32 %s19, %s26
      %p138 = scmp.eq.s32.totalorder %s137, 0
      %s140 = sadd.s32 %s139, 1
      %s141 = scalar_select %p138, %s139, %s140
      %p144 = pneg %p138
      %p145 = scmp.eq.s32.totalorder %s19, 1
      %p146 = por %p144, %p145
      %p147 = scmp.ne.s32.totalorder %s139, %s142
      %p148 = scmp.eq.s32.totalorder %s19, 0
      %p149 = por %p147, %p148
      %p150 = scmp.ne.s32.totalorder %s139, %s142
      %p151 = scmp.eq.s32.totalorder %s24, 1
      %p152 = por %p150, %p151
      %p153 = scmp.ne.s32.totalorder %s142, %s143
      %p154 = scmp.eq.s32.totalorder %s24, 0
      %p155 = por %p153, %p154
      %p156 = scmp.ne.s32.totalorder %s142, %s143
      %p157 = scmp.eq.s32.totalorder %s25, 1
      %p158 = por %p156, %p157
      %p160 = scmp.ne.s32.totalorder %s143, %s159
      %p161 = scmp.eq.s32.totalorder %s25, 0
      %p162 = por %p160, %p161
      %p163 = scmp.le.s32.totalorder 1, %s19
      %p164 = scmp.lt.s32.totalorder %s19, 3
      %p165 = pnand %p163, %p164
      %p166 = pneg %p165
      // Predicated region
      $region9: #{tpu_custom_call.1} parent=5 // pred_check
        _
      $region10: #{tpu_custom_call.1} parent=5 // pred_check_branch
        %168 = sbr.rel (%p165) target = $region12
      $region11: #{tpu_custom_call.1} parent=5 // pred_region
        %s169 = ssub.s32 %s19, 1
        // Predicated region
        $region13: #{tpu_custom_call.1} parent=11 // pred_check
          %p170 = pneg %p66
        $region14: #{tpu_custom_call.1} parent=11 // pred_check_branch
          %172 = sbr.rel (%p170) target = $region16
        $region15: #{tpu_custom_call.1} parent=11 // pred_region
          %174 = vsyncadd [#allocation6], 0
          %s175 = sshll.u32 %s1, 4
          %s176 = int_to_ptr.hbm [resolvable:$true] %s175
          %s177 = sshll.u32 [#allocation5], 4
          %s178 = int_to_ptr.vmem [resolvable:$true] %s177
          %183 = dma.hbm_to_vmem [thread:$0]  %s176, 2048, %s178, [#allocation6], 128, 128, 8
        $region16: #{tpu_custom_call.1} parent=11 // pred_fallthru
          _
        // Predicated region
        $region17: #{tpu_custom_call.1} parent=11 // pred_check
          %p184 = pneg %p87
        $region18: #{tpu_custom_call.1} parent=11 // pred_check_branch
          %186 = sbr.rel (%p184) target = $region20
        $region19: #{tpu_custom_call.1} parent=11 // pred_region
          %188 = vsyncadd [#allocation6], 0
          %s190 = sshll.u32 %s2, 4
          %s191 = int_to_ptr.hbm [resolvable:$true] %s190
          %s192 = sshll.u32 [#allocation7], 4
          %s193 = int_to_ptr.vmem [resolvable:$true] %s192
          %195 = dma.hbm_to_vmem [thread:$0]  %s191, 32, %s193, [#allocation6]
        $region20: #{tpu_custom_call.1} parent=11 // pred_fallthru
          _
        // Predicated region
        $region21: #{tpu_custom_call.1} parent=11 // pred_check
          %p196 = pneg %p108
        $region22: #{tpu_custom_call.1} parent=11 // pred_check_branch
          %198 = sbr.rel (%p196) target = $region24
        $region23: #{tpu_custom_call.1} parent=11 // pred_region
          _
        $region24: #{tpu_custom_call.1} parent=11 // pred_fallthru
          _
        // Predicated region
        $region25: #{tpu_custom_call.1} parent=11 // pred_check
          %p199 = pneg %p129
        $region26: #{tpu_custom_call.1} parent=11 // pred_check_branch
          %201 = sbr.rel (%p199) target = $region28
        $region27: #{tpu_custom_call.1} parent=11 // pred_region
          %203 = vsyncadd [#allocation9], 0
          %s204 = sshll.u32 %s4, 4
          %s205 = int_to_ptr.hbm [resolvable:$true] %s204
          %s206 = sshll.u32 [#allocation8], 4
          %s207 = int_to_ptr.vmem [resolvable:$true] %s206
          %212 = dma.hbm_to_vmem [thread:$0]  %s205, 2048, %s207, [#allocation9], 64, 64, 4
        $region28: #{tpu_custom_call.1} parent=11 // pred_fallthru
          _
      $region12: #{tpu_custom_call.1} parent=5 // pred_fallthru
        _
      %p213 = scmp.lt.s32.totalorder %s19, 2
      // Predicated region
      $region29: #{tpu_custom_call.1} parent=5 // pred_check
        %p214 = pneg %p213
      $region30: #{tpu_custom_call.1} parent=5 // pred_check_branch
        %216 = sbr.rel (%p214) target = $region32
      $region31: #{tpu_custom_call.1} parent=5 // pred_region
        // Predicated region
        $region33: #{tpu_custom_call.1} parent=31 // pred_check
          %p217 = pneg %p39
        $region34: #{tpu_custom_call.1} parent=31 // pred_check_branch
          %219 = sbr.rel (%p217) target = $region36
        $region35: #{tpu_custom_call.1} parent=31 // pred_region
          %s220 = sand.u32 %s29, 1
          %s221 = scalar_lea.sflag [#allocation3], %s220
          %s222 = sand.u32 %s29, 1
          %s223 = smul.addr %s222, 128
          %s224 = scalar_lea.vmem [#allocation2], %s223
          %s225 = smul.u32 32, %s19
          %227 = vsyncadd %s221, 0
          %s228 = smul.addr %s225, 4
          %s229 = scalar_lea.hbm %s0, %s228
          %s230 = sshll.u32 %s229, 4
          %s231 = int_to_ptr.hbm [resolvable:$true] %s230
          %s232 = sshll.u32 %s224, 4
          %s233 = int_to_ptr.vmem [resolvable:$true] %s232
          %238 = dma.hbm_to_vmem [thread:$0]  %s231, 2048, %s233, %s221, 64, 64, 4
        $region36: #{tpu_custom_call.1} parent=31 // pred_fallthru
          _
      $region32: #{tpu_custom_call.1} parent=5 // pred_fallthru
        _
      %p239 = scmp.le.s32.totalorder 1, %s19
      %p240 = scmp.lt.s32.totalorder %s19, 3
      %p241 = pnand %p239, %p240
      %p242 = pneg %p241
      // Predicated region
      $region37: #{tpu_custom_call.1} parent=5 // pred_check
        _
      $region38: #{tpu_custom_call.1} parent=5 // pred_check_branch
        %244 = sbr.rel (%p241) target = $region40
      $region39: #{tpu_custom_call.1} parent=5 // pred_region
        %s245 = ssub.s32 %s19, 1
        %s246 = sand.u32 %s32, 1
        %s247 = scalar_lea.sflag [#allocation3], %s246
        %s248 = sand.u32 %s32, 1
        %s249 = smul.addr %s248, 128
        %s250 = scalar_lea.vmem [#allocation2], %s249
        // Predicated region
        $region41: #{tpu_custom_call.1} parent=39 // pred_check
          %p251 = pneg %p45
        $region42: #{tpu_custom_call.1} parent=39 // pred_check_branch
          %253 = sbr.rel (%p251) target = $region44
        $region43: #{tpu_custom_call.1} parent=39 // pred_region
          %255 = dma.done %s247, 2048
        $region44: #{tpu_custom_call.1} parent=39 // pred_fallthru
          _
        // Predicated region
        $region45: #{tpu_custom_call.1} parent=39 // pred_check
          %p256 = pneg %p66
        $region46: #{tpu_custom_call.1} parent=39 // pred_check_branch
          %258 = sbr.rel (%p256) target = $region48
        $region47: #{tpu_custom_call.1} parent=39 // pred_region
          %260 = dma.done [#allocation6], 2048
        $region48: #{tpu_custom_call.1} parent=39 // pred_fallthru
          _
        // Predicated region
        $region49: #{tpu_custom_call.1} parent=39 // pred_check
          %p261 = pneg %p87
        $region50: #{tpu_custom_call.1} parent=39 // pred_check_branch
          %263 = sbr.rel (%p261) target = $region52
        $region51: #{tpu_custom_call.1} parent=39 // pred_region
          %265 = dma.done [#allocation6], 32
        $region52: #{tpu_custom_call.1} parent=39 // pred_fallthru
          _
        // Predicated region
        $region53: #{tpu_custom_call.1} parent=39 // pred_check
          %p266 = pneg %p129
        $region54: #{tpu_custom_call.1} parent=39 // pred_check_branch
          %268 = sbr.rel (%p266) target = $region56
        $region55: #{tpu_custom_call.1} parent=39 // pred_region
          %270 = dma.done [#allocation9], 2048
        $region56: #{tpu_custom_call.1} parent=39 // pred_fallthru
          _
        %s271 = sand.u32 %s32, 1
        %s272 = scalar_lea.sflag [#allocation3], %s271
        %s273 = sand.u32 %s32, 1
        %s274 = smul.addr %s273, 128
        %s275 = scalar_lea.vmem [#allocation2], %s274
        %p276 = pneg %p45
        %p277 = pneg %p42
        %p278 = pneg %p66
        %p279 = pneg %p63
        %p280 = pneg %p87
        %p281 = pneg %p84
        %p282 = pneg %p108
        %p283 = pneg %p105
        %p284 = pneg %p129
        %p285 = pneg %p126
        %p286 = pneg %p155
        %p287 = pneg %p152
        %s288 = sand.u32 %s142, 1
        %s289 = scalar_lea.sflag [#allocation4], %s288
        %s290 = sand.u32 %s142, 1
        %s291 = smul.addr %s290, 128
        %s292 = scalar_lea.vmem [#allocation10], %s291
        %s293 = smul.u32 32, %s24
        %s294 = smul.u32 32, %s24
        %v295 = vld [vmem:[%s250] sm:$0xf]
        %v296 = vld [vmem:[%s250 + $0x4] sm:$0xf]
        %v297 = vld [vmem:[%s250 + $0x8] sm:$0xf]
        %v298 = vld [vmem:[%s250 + $0xc] sm:$0xf]
        %v299 = vld [vmem:[%s250 + $0x10] sm:$0xf]
        %v300 = vld [vmem:[%s250 + $0x14] sm:$0xf]
        %v301 = vld [vmem:[%s250 + $0x18] sm:$0xf]
        %v302 = vld [vmem:[%s250 + $0x1c] sm:$0xf]
        %v303 = vld [vmem:[%s250 + $0x20] sm:$0xf]
        %v304 = vld [vmem:[%s250 + $0x24] sm:$0xf]
        %v305 = vld [vmem:[%s250 + $0x28] sm:$0xf]
        %v306 = vld [vmem:[%s250 + $0x2c] sm:$0xf]
        %v307 = vld [vmem:[%s250 + $0x30] sm:$0xf]
        %v308 = vld [vmem:[%s250 + $0x34] sm:$0xf]
        %v309 = vld [vmem:[%s250 + $0x38] sm:$0xf]
        %v310 = vld [vmem:[%s250 + $0x3c] sm:$0xf]
        %v311 = vld [vmem:[%s250 + $0x40] sm:$0xf]
        %v312 = vld [vmem:[%s250 + $0x44] sm:$0xf]
        %v313 = vld [vmem:[%s250 + $0x48] sm:$0xf]
        %v314 = vld [vmem:[%s250 + $0x4c] sm:$0xf]
        %v315 = vld [vmem:[%s250 + $0x50] sm:$0xf]
        %v316 = vld [vmem:[%s250 + $0x54] sm:$0xf]
        %v317 = vld [vmem:[%s250 + $0x58] sm:$0xf]
        %v318 = vld [vmem:[%s250 + $0x5c] sm:$0xf]
        %v319 = vld [vmem:[%s250 + $0x60] sm:$0xf]
        %v320 = vld [vmem:[%s250 + $0x64] sm:$0xf]
        %v321 = vld [vmem:[%s250 + $0x68] sm:$0xf]
        %v322 = vld [vmem:[%s250 + $0x6c] sm:$0xf]
        %v323 = vld [vmem:[%s250 + $0x70] sm:$0xf]
        %v324 = vld [vmem:[%s250 + $0x74] sm:$0xf]
        %v325 = vld [vmem:[%s250 + $0x78] sm:$0xf]
        %v326 = vld [vmem:[%s250 + $0x7c] sm:$0xf]
        %v327 = vld [vmem:[#allocation5] sm:$0xff]
        %v328 = vld [vmem:[#allocation5 + $0x8] sm:$0xff]
        %v329 = vld [vmem:[#allocation5 + $0x10] sm:$0xff]
        %v330 = vld [vmem:[#allocation5 + $0x18] sm:$0xff]
        %v331 = vld [vmem:[#allocation5 + $0x20] sm:$0xff]
        %v332 = vld [vmem:[#allocation5 + $0x28] sm:$0xff]
        %v333 = vld [vmem:[#allocation5 + $0x30] sm:$0xff]
        %v334 = vld [vmem:[#allocation5 + $0x38] sm:$0xff]
        %v335 = vld [vmem:[#allocation5 + $0x40] sm:$0xff]
        %v336 = vld [vmem:[#allocation5 + $0x48] sm:$0xff]
        %v337 = vld [vmem:[#allocation5 + $0x50] sm:$0xff]
        %v338 = vld [vmem:[#allocation5 + $0x58] sm:$0xff]
        %v339 = vld [vmem:[#allocation5 + $0x60] sm:$0xff]
        %v340 = vld [vmem:[#allocation5 + $0x68] sm:$0xff]
        %v341 = vld [vmem:[#allocation5 + $0x70] sm:$0xff]
        %v342 = vld [vmem:[#allocation5 + $0x78] sm:$0xff]
        %v375 = vunpack.c.l.b16 %v295
        %v376 = vunpack.c.l.b16 %v296
        %v377 = vunpack.c.l.b16 %v297
        %v378 = vunpack.c.l.b16 %v298
        %v379 = vunpack.c.l.b16 %v299
        %v380 = vunpack.c.l.b16 %v300
        %v381 = vunpack.c.l.b16 %v301
        %v382 = vunpack.c.l.b16 %v302
        %v383 = vunpack.c.l.b16 %v303
        %v384 = vunpack.c.l.b16 %v304
        %v385 = vunpack.c.l.b16 %v305
        %v386 = vunpack.c.l.b16 %v306
        %v387 = vunpack.c.l.b16 %v307
        %v388 = vunpack.c.l.b16 %v308
        %v389 = vunpack.c.l.b16 %v309
        %v390 = vunpack.c.l.b16 %v310
        %v391 = vunpack.c.l.b16 %v311
        %v392 = vunpack.c.l.b16 %v312
        %v393 = vunpack.c.l.b16 %v313
        %v394 = vunpack.c.l.b16 %v314
        %v395 = vunpack.c.l.b16 %v315
        %v396 = vunpack.c.l.b16 %v316
        %v397 = vunpack.c.l.b16 %v317
        %v398 = vunpack.c.l.b16 %v318
        %v399 = vunpack.c.l.b16 %v319
        %v400 = vunpack.c.l.b16 %v320
        %v401 = vunpack.c.l.b16 %v321
        %v402 = vunpack.c.l.b16 %v322
        %v403 = vunpack.c.l.b16 %v323
        %v404 = vunpack.c.l.b16 %v324
        %v405 = vunpack.c.l.b16 %v325
        %v406 = vunpack.c.l.b16 %v326
        %v407 = vpack.c.b16 %v376, %v375
        %v408 = vpack.c.b16 %v378, %v377
        %v409 = vpack.c.b16 %v380, %v379
        %v410 = vpack.c.b16 %v382, %v381
        %v411 = vpack.c.b16 %v384, %v383
        %v412 = vpack.c.b16 %v386, %v385
        %v413 = vpack.c.b16 %v388, %v387
        %v414 = vpack.c.b16 %v390, %v389
        %v415 = vpack.c.b16 %v392, %v391
        %v416 = vpack.c.b16 %v394, %v393
        %v417 = vpack.c.b16 %v396, %v395
        %v418 = vpack.c.b16 %v398, %v397
        %v419 = vpack.c.b16 %v400, %v399
        %v420 = vpack.c.b16 %v402, %v401
        %v421 = vpack.c.b16 %v404, %v403
        %v422 = vpack.c.b16 %v406, %v405
        %v455 = vunpack.c.l.b16 %v327
        %v456 = vunpack.c.h.b16 %v327
        %v457 = vunpack.c.l.b16 %v328
        %v458 = vunpack.c.h.b16 %v328
        %v459 = vunpack.c.l.b16 %v329
        %v460 = vunpack.c.h.b16 %v329
        %v461 = vunpack.c.l.b16 %v330
        %v462 = vunpack.c.h.b16 %v330
        %v463 = vunpack.c.l.b16 %v331
        %v464 = vunpack.c.h.b16 %v331
        %v465 = vunpack.c.l.b16 %v332
        %v466 = vunpack.c.h.b16 %v332
        %v467 = vunpack.c.l.b16 %v333
        %v468 = vunpack.c.h.b16 %v333
        %v469 = vunpack.c.l.b16 %v334
        %v470 = vunpack.c.h.b16 %v334
        %v471 = vunpack.c.l.b16 %v335
        %v472 = vunpack.c.h.b16 %v335
        %v473 = vunpack.c.l.b16 %v336
        %v474 = vunpack.c.h.b16 %v336
        %v475 = vunpack.c.l.b16 %v337
        %v476 = vunpack.c.h.b16 %v337
        %v477 = vunpack.c.l.b16 %v338
        %v478 = vunpack.c.h.b16 %v338
        %v479 = vunpack.c.l.b16 %v339
        %v480 = vunpack.c.h.b16 %v339
        %v481 = vunpack.c.l.b16 %v340
        %v482 = vunpack.c.h.b16 %v340
        %v483 = vunpack.c.l.b16 %v341
        %v484 = vunpack.c.h.b16 %v341
        %v485 = vunpack.c.l.b16 %v342
        %v486 = vunpack.c.h.b16 %v342
        %v487 = vpack.c.b16 %v457, %v455
        %v488 = vpack.c.b16 %v458, %v456
        %v489 = vpack.c.b16 %v461, %v459
        %v490 = vpack.c.b16 %v462, %v460
        %v491 = vpack.c.b16 %v465, %v463
        %v492 = vpack.c.b16 %v466, %v464
        %v493 = vpack.c.b16 %v469, %v467
        %v494 = vpack.c.b16 %v470, %v468
        %v495 = vpack.c.b16 %v473, %v471
        %v496 = vpack.c.b16 %v474, %v472
        %v497 = vpack.c.b16 %v477, %v475
        %v498 = vpack.c.b16 %v478, %v476
        %v499 = vpack.c.b16 %v481, %v479
        %v500 = vpack.c.b16 %v482, %v480
        %v501 = vpack.c.b16 %v485, %v483
        %v502 = vpack.c.b16 %v486, %v484
        %519 = vmatpush.bf16.msra.mxu0 %v501
        %520 = vmatpush.bf16.msra.mxu0 %v499
        %521 = vmatpush.bf16.msra.mxu0 %v497
        %522 = vmatpush.bf16.msra.mxu0 %v495
        %523 = vmatpush.bf16.msra.mxu0 %v493
        %524 = vmatpush.bf16.msra.mxu0 %v491
        %525 = vmatpush.bf16.msra.mxu0 %v489
        %526 = vmatpush.bf16.msra.mxu0 %v487
        %527 = vmatmul.bf16.gmra.mxu0 %v407
        %v528 = vpop.f32.mrf.mxu0
        %v529 = vadd.f32 0.0, %v528
        %v530 = vpop.f32.mrf.mxu0
        %v531 = vadd.f32 0.0, %v530
        %532 = vmatmul.bf16.gmra.mxu0 %v408
        %v533 = vpop.f32.mrf.mxu0
        %v534 = vadd.f32 0.0, %v533
        %v535 = vpop.f32.mrf.mxu0
        %v536 = vadd.f32 0.0, %v535
        %537 = vmatmul.bf16.gmra.mxu0 %v409
        %v538 = vpop.f32.mrf.mxu0
        %v539 = vadd.f32 0.0, %v538
        %v540 = vpop.f32.mrf.mxu0
        %v541 = vadd.f32 0.0, %v540
        %542 = vmatmul.bf16.gmra.mxu0 %v410
        %v543 = vpop.f32.mrf.mxu0
        %v544 = vadd.f32 0.0, %v543
        %v545 = vpop.f32.mrf.mxu0
        %v546 = vadd.f32 0.0, %v545
        %547 = vmatmul.bf16.gmra.mxu0 %v411
        %v548 = vpop.f32.mrf.mxu0
        %v549 = vadd.f32 0.0, %v548
        %v550 = vpop.f32.mrf.mxu0
        %v551 = vadd.f32 0.0, %v550
        %552 = vmatmul.bf16.gmra.mxu0 %v412
        %v553 = vpop.f32.mrf.mxu0
        %v554 = vadd.f32 0.0, %v553
        %v555 = vpop.f32.mrf.mxu0
        %v556 = vadd.f32 0.0, %v555
        %557 = vmatmul.bf16.gmra.mxu0 %v413
        %v558 = vpop.f32.mrf.mxu0
        %v559 = vadd.f32 0.0, %v558
        %v560 = vpop.f32.mrf.mxu0
        %v561 = vadd.f32 0.0, %v560
        %562 = vmatmul.bf16.gmra.mxu0 %v414
        %v563 = vpop.f32.mrf.mxu0
        %v564 = vadd.f32 0.0, %v563
        %v565 = vpop.f32.mrf.mxu0
        %v566 = vadd.f32 0.0, %v565
        %567 = vmatmul.bf16.gmra.mxu0 %v415
        %v568 = vpop.f32.mrf.mxu0
        %v569 = vadd.f32 0.0, %v568
        %v570 = vpop.f32.mrf.mxu0
        %v571 = vadd.f32 0.0, %v570
        %572 = vmatmul.bf16.gmra.mxu0 %v416
        %v573 = vpop.f32.mrf.mxu0
        %v574 = vadd.f32 0.0, %v573
        %v575 = vpop.f32.mrf.mxu0
        %v576 = vadd.f32 0.0, %v575
        %577 = vmatmul.bf16.gmra.mxu0 %v417
        %v578 = vpop.f32.mrf.mxu0
        %v579 = vadd.f32 0.0, %v578
        %v580 = vpop.f32.mrf.mxu0
        %v581 = vadd.f32 0.0, %v580
        %582 = vmatmul.bf16.gmra.mxu0 %v418
        %v583 = vpop.f32.mrf.mxu0
        %v584 = vadd.f32 0.0, %v583
        %v585 = vpop.f32.mrf.mxu0
        %v586 = vadd.f32 0.0, %v585
        %587 = vmatmul.bf16.gmra.mxu0 %v419
        %v588 = vpop.f32.mrf.mxu0
        %v589 = vadd.f32 0.0, %v588
        %v590 = vpop.f32.mrf.mxu0
        %v591 = vadd.f32 0.0, %v590
        %592 = vmatmul.bf16.gmra.mxu0 %v420
        %v593 = vpop.f32.mrf.mxu0
        %v594 = vadd.f32 0.0, %v593
        %v595 = vpop.f32.mrf.mxu0
        %v596 = vadd.f32 0.0, %v595
        %597 = vmatmul.bf16.gmra.mxu0 %v421
        %v598 = vpop.f32.mrf.mxu0
        %v599 = vadd.f32 0.0, %v598
        %v600 = vpop.f32.mrf.mxu0
        %v601 = vadd.f32 0.0, %v600
        %602 = vmatmul.bf16.gmra.mxu0 %v422
        %v603 = vpop.f32.mrf.mxu0
        %v604 = vadd.f32 0.0, %v603
        %v605 = vpop.f32.mrf.mxu0
        %v606 = vadd.f32 0.0, %v605
        %607 = vdwg.mxu0
        %608 = vmatpush.bf16.msra.mxu0 %v502
        %609 = vmatpush.bf16.msra.mxu0 %v500
        %610 = vmatpush.bf16.msra.mxu0 %v498
        %611 = vmatpush.bf16.msra.mxu0 %v496
        %612 = vmatpush.bf16.msra.mxu0 %v494
        %613 = vmatpush.bf16.msra.mxu0 %v492
        %614 = vmatpush.bf16.msra.mxu0 %v490
        %615 = vmatpush.bf16.msra.mxu0 %v488
        %616 = vmatmul.bf16.gmra.mxu0 %v407
        %v617 = vpop.f32.mrf.mxu0
        %v618 = vadd.f32 0.0, %v617
        %v619 = vpop.f32.mrf.mxu0
        %v620 = vadd.f32 0.0, %v619
        %621 = vmatmul.bf16.gmra.mxu0 %v408
        %v622 = vpop.f32.mrf.mxu0
        %v623 = vadd.f32 0.0, %v622
        %v624 = vpop.f32.mrf.mxu0
        %v625 = vadd.f32 0.0, %v624
        %626 = vmatmul.bf16.gmra.mxu0 %v409
        %v627 = vpop.f32.mrf.mxu0
        %v628 = vadd.f32 0.0, %v627
        %v629 = vpop.f32.mrf.mxu0
        %v630 = vadd.f32 0.0, %v629
        %631 = vmatmul.bf16.gmra.mxu0 %v410
        %v632 = vpop.f32.mrf.mxu0
        %v633 = vadd.f32 0.0, %v632
        %v634 = vpop.f32.mrf.mxu0
        %v635 = vadd.f32 0.0, %v634
        %636 = vmatmul.bf16.gmra.mxu0 %v411
        %v637 = vpop.f32.mrf.mxu0
        %v638 = vadd.f32 0.0, %v637
        %v639 = vpop.f32.mrf.mxu0
        %v640 = vadd.f32 0.0, %v639
        %641 = vmatmul.bf16.gmra.mxu0 %v412
        %v642 = vpop.f32.mrf.mxu0
        %v643 = vadd.f32 0.0, %v642
        %v644 = vpop.f32.mrf.mxu0
        %v645 = vadd.f32 0.0, %v644
        %646 = vmatmul.bf16.gmra.mxu0 %v413
        %v647 = vpop.f32.mrf.mxu0
        %v648 = vadd.f32 0.0, %v647
        %v649 = vpop.f32.mrf.mxu0
        %v650 = vadd.f32 0.0, %v649
        %651 = vmatmul.bf16.gmra.mxu0 %v414
        %v652 = vpop.f32.mrf.mxu0
        %v653 = vadd.f32 0.0, %v652
        %v654 = vpop.f32.mrf.mxu0
        %v655 = vadd.f32 0.0, %v654
        %656 = vmatmul.bf16.gmra.mxu0 %v415
        %v657 = vpop.f32.mrf.mxu0
        %v658 = vadd.f32 0.0, %v657
        %v659 = vpop.f32.mrf.mxu0
        %v660 = vadd.f32 0.0, %v659
        %661 = vmatmul.bf16.gmra.mxu0 %v416
        %v662 = vpop.f32.mrf.mxu0
        %v663 = vadd.f32 0.0, %v662
        %v664 = vpop.f32.mrf.mxu0
        %v665 = vadd.f32 0.0, %v664
        %666 = vmatmul.bf16.gmra.mxu0 %v417
        %v667 = vpop.f32.mrf.mxu0
        %v668 = vadd.f32 0.0, %v667
        %v669 = vpop.f32.mrf.mxu0
        %v670 = vadd.f32 0.0, %v669
        %671 = vmatmul.bf16.gmra.mxu0 %v418
        %v672 = vpop.f32.mrf.mxu0
        %v673 = vadd.f32 0.0, %v672
        %v674 = vpop.f32.mrf.mxu0
        %v675 = vadd.f32 0.0, %v674
        %676 = vmatmul.bf16.gmra.mxu0 %v419
        %v677 = vpop.f32.mrf.mxu0
        %v678 = vadd.f32 0.0, %v677
        %v679 = vpop.f32.mrf.mxu0
        %v680 = vadd.f32 0.0, %v679
        %681 = vmatmul.bf16.gmra.mxu0 %v420
        %v682 = vpop.f32.mrf.mxu0
        %v683 = vadd.f32 0.0, %v682
        %v684 = vpop.f32.mrf.mxu0
        %v685 = vadd.f32 0.0, %v684
        %686 = vmatmul.bf16.gmra.mxu0 %v421
        %v687 = vpop.f32.mrf.mxu0
        %v688 = vadd.f32 0.0, %v687
        %v689 = vpop.f32.mrf.mxu0
        %v690 = vadd.f32 0.0, %v689
        %691 = vmatmul.bf16.gmra.mxu0 %v422
        %v692 = vpop.f32.mrf.mxu0
        %v693 = vadd.f32 0.0, %v692
        %v694 = vpop.f32.mrf.mxu0
        %v695 = vadd.f32 0.0, %v694
        %696 = vdwg.mxu0
        %v697 = vld [vmem:[#allocation7] sm:$0x3]
        %v698 = vld [vmem:[%s3] sm:$0x3]
        %v699 = vadd.f32 %v529, %v618
        %700 = vadd.xlane.f32.xlu0 %v699
        %v701 = vpop.xlane.xlu0 %700
        %v702 = vadd.f32 %v531, %v620
        %703 = vadd.xlane.f32.xlu0 %v702
        %v704 = vpop.xlane.xlu0 %703
        %v705 = vadd.f32 %v534, %v623
        %706 = vadd.xlane.f32.xlu0 %v705
        %v707 = vpop.xlane.xlu0 %706
        %v708 = vadd.f32 %v536, %v625
        %709 = vadd.xlane.f32.xlu0 %v708
        %v710 = vpop.xlane.xlu0 %709
        %v711 = vadd.f32 %v539, %v628
        %712 = vadd.xlane.f32.xlu0 %v711
        %v713 = vpop.xlane.xlu0 %712
        %v714 = vadd.f32 %v541, %v630
        %715 = vadd.xlane.f32.xlu0 %v714
        %v716 = vpop.xlane.xlu0 %715
        %v717 = vadd.f32 %v544, %v633
        %718 = vadd.xlane.f32.xlu0 %v717
        %v719 = vpop.xlane.xlu0 %718
        %v720 = vadd.f32 %v546, %v635
        %721 = vadd.xlane.f32.xlu0 %v720
        %v722 = vpop.xlane.xlu0 %721
        %v723 = vadd.f32 %v549, %v638
        %724 = vadd.xlane.f32.xlu0 %v723
        %v725 = vpop.xlane.xlu0 %724
        %v726 = vadd.f32 %v551, %v640
        %727 = vadd.xlane.f32.xlu0 %v726
        %v728 = vpop.xlane.xlu0 %727
        %v729 = vadd.f32 %v554, %v643
        %730 = vadd.xlane.f32.xlu0 %v729
        %v731 = vpop.xlane.xlu0 %730
        %v732 = vadd.f32 %v556, %v645
        %733 = vadd.xlane.f32.xlu0 %v732
        %v734 = vpop.xlane.xlu0 %733
        %v735 = vadd.f32 %v559, %v648
        %736 = vadd.xlane.f32.xlu0 %v735
        %v737 = vpop.xlane.xlu0 %736
        %v738 = vadd.f32 %v561, %v650
        %739 = vadd.xlane.f32.xlu0 %v738
        %v740 = vpop.xlane.xlu0 %739
        %v741 = vadd.f32 %v564, %v653
        %742 = vadd.xlane.f32.xlu0 %v741
        %v743 = vpop.xlane.xlu0 %742
        %v744 = vadd.f32 %v566, %v655
        %745 = vadd.xlane.f32.xlu0 %v744
        %v746 = vpop.xlane.xlu0 %745
        %v747 = vadd.f32 %v569, %v658
        %748 = vadd.xlane.f32.xlu0 %v747
        %v749 = vpop.xlane.xlu0 %748
        %v750 = vadd.f32 %v571, %v660
        %751 = vadd.xlane.f32.xlu0 %v750
        %v752 = vpop.xlane.xlu0 %751
        %v753 = vadd.f32 %v574, %v663
        %754 = vadd.xlane.f32.xlu0 %v753
        %v755 = vpop.xlane.xlu0 %754
        %v756 = vadd.f32 %v576, %v665
        %757 = vadd.xlane.f32.xlu0 %v756
        %v758 = vpop.xlane.xlu0 %757
        %v759 = vadd.f32 %v579, %v668
        %760 = vadd.xlane.f32.xlu0 %v759
        %v761 = vpop.xlane.xlu0 %760
        %v762 = vadd.f32 %v581, %v670
        %763 = vadd.xlane.f32.xlu0 %v762
        %v764 = vpop.xlane.xlu0 %763
        %v765 = vadd.f32 %v584, %v673
        %766 = vadd.xlane.f32.xlu0 %v765
        %v767 = vpop.xlane.xlu0 %766
        %v768 = vadd.f32 %v586, %v675
        %769 = vadd.xlane.f32.xlu0 %v768
        %v770 = vpop.xlane.xlu0 %769
        %v771 = vadd.f32 %v589, %v678
        %772 = vadd.xlane.f32.xlu0 %v771
        %v773 = vpop.xlane.xlu0 %772
        %v774 = vadd.f32 %v591, %v680
        %775 = vadd.xlane.f32.xlu0 %v774
        %v776 = vpop.xlane.xlu0 %775
        %v777 = vadd.f32 %v594, %v683
        %778 = vadd.xlane.f32.xlu0 %v777
        %v779 = vpop.xlane.xlu0 %778
        %v780 = vadd.f32 %v596, %v685
        %781 = vadd.xlane.f32.xlu0 %v780
        %v782 = vpop.xlane.xlu0 %781
        %v783 = vadd.f32 %v599, %v688
        %784 = vadd.xlane.f32.xlu0 %v783
        %v785 = vpop.xlane.xlu0 %784
        %v786 = vadd.f32 %v601, %v690
        %787 = vadd.xlane.f32.xlu0 %v786
        %v788 = vpop.xlane.xlu0 %787
        %v789 = vadd.f32 %v604, %v693
        %790 = vadd.xlane.f32.xlu0 %v789
        %v791 = vpop.xlane.xlu0 %790
        %v792 = vadd.f32 %v606, %v695
        %793 = vadd.xlane.f32.xlu0 %v792
        %v794 = vpop.xlane.xlu0 %793
        %v795 = vrcp.pop 256.0
        %v796 = vmul.f32 256.0, %v795
        %v797 = vsub.f32 1.0, %v796
        %v798 = vmul.f32 %v795, %v797
        %v799 = vadd.f32 %v795, %v798
        %vm800 = vweird.f32 %v795
        %v801 = vsel %vm800, %v795, %v799
        %v802 = vmul.f32 %v701, %v801
        %v803 = vmul.f32 %v704, %v801
        %v804 = vmul.f32 %v707, %v801
        %v805 = vmul.f32 %v710, %v801
        %v806 = vmul.f32 %v713, %v801
        %v807 = vmul.f32 %v716, %v801
        %v808 = vmul.f32 %v719, %v801
        %v809 = vmul.f32 %v722, %v801
        %v810 = vmul.f32 %v725, %v801
        %v811 = vmul.f32 %v728, %v801
        %v812 = vmul.f32 %v731, %v801
        %v813 = vmul.f32 %v734, %v801
        %v814 = vmul.f32 %v737, %v801
        %v815 = vmul.f32 %v740, %v801
        %v816 = vmul.f32 %v743, %v801
        %v817 = vmul.f32 %v746, %v801
        %v818 = vmul.f32 %v749, %v801
        %v819 = vmul.f32 %v752, %v801
        %v820 = vmul.f32 %v755, %v801
        %v821 = vmul.f32 %v758, %v801
        %v822 = vmul.f32 %v761, %v801
        %v823 = vmul.f32 %v764, %v801
        %v824 = vmul.f32 %v767, %v801
        %v825 = vmul.f32 %v770, %v801
        %v826 = vmul.f32 %v773, %v801
        %v827 = vmul.f32 %v776, %v801
        %v828 = vmul.f32 %v779, %v801
        %v829 = vmul.f32 %v782, %v801
        %v830 = vmul.f32 %v785, %v801
        %v831 = vmul.f32 %v788, %v801
        %v832 = vmul.f32 %v791, %v801
        %v833 = vmul.f32 %v794, %v801
        %v834 = vmul.f32 %v529, %v529
        %v835 = vmul.f32 %v618, %v618
        %v836 = vmul.f32 %v531, %v531
        %v837 = vmul.f32 %v620, %v620
        %v838 = vmul.f32 %v534, %v534
        %v839 = vmul.f32 %v623, %v623
        %v840 = vmul.f32 %v536, %v536
        %v841 = vmul.f32 %v625, %v625
        %v842 = vmul.f32 %v539, %v539
        %v843 = vmul.f32 %v628, %v628
        %v844 = vmul.f32 %v541, %v541
        %v845 = vmul.f32 %v630, %v630
        %v846 = vmul.f32 %v544, %v544
        %v847 = vmul.f32 %v633, %v633
        %v848 = vmul.f32 %v546, %v546
        %v849 = vmul.f32 %v635, %v635
        %v850 = vmul.f32 %v549, %v549
        %v851 = vmul.f32 %v638, %v638
        %v852 = vmul.f32 %v551, %v551
        %v853 = vmul.f32 %v640, %v640
        %v854 = vmul.f32 %v554, %v554
        %v855 = vmul.f32 %v643, %v643
        %v856 = vmul.f32 %v556, %v556
        %v857 = vmul.f32 %v645, %v645
        %v858 = vmul.f32 %v559, %v559
        %v859 = vmul.f32 %v648, %v648
        %v860 = vmul.f32 %v561, %v561
        %v861 = vmul.f32 %v650, %v650
        %v862 = vmul.f32 %v564, %v564
        %v863 = vmul.f32 %v653, %v653
        %v864 = vmul.f32 %v566, %v566
        %v865 = vmul.f32 %v655, %v655
        %v866 = vmul.f32 %v569, %v569
        %v867 = vmul.f32 %v658, %v658
        %v868 = vmul.f32 %v571, %v571
        %v869 = vmul.f32 %v660, %v660
        %v870 = vmul.f32 %v574, %v574
        %v871 = vmul.f32 %v663, %v663
        %v872 = vmul.f32 %v576, %v576
        %v873 = vmul.f32 %v665, %v665
        %v874 = vmul.f32 %v579, %v579
        %v875 = vmul.f32 %v668, %v668
        %v876 = vmul.f32 %v581, %v581
        %v877 = vmul.f32 %v670, %v670
        %v878 = vmul.f32 %v584, %v584
        %v879 = vmul.f32 %v673, %v673
        %v880 = vmul.f32 %v586, %v586
        %v881 = vmul.f32 %v675, %v675
        %v882 = vmul.f32 %v589, %v589
        %v883 = vmul.f32 %v678, %v678
        %v884 = vmul.f32 %v591, %v591
        %v885 = vmul.f32 %v680, %v680
        %v886 = vmul.f32 %v594, %v594
        %v887 = vmul.f32 %v683, %v683
        %v888 = vmul.f32 %v596, %v596
        %v889 = vmul.f32 %v685, %v685
        %v890 = vmul.f32 %v599, %v599
        %v891 = vmul.f32 %v688, %v688
        %v892 = vmul.f32 %v601, %v601
        %v893 = vmul.f32 %v690, %v690
        %v894 = vmul.f32 %v604, %v604
        %v895 = vmul.f32 %v693, %v693
        %v896 = vmul.f32 %v606, %v606
        %v897 = vmul.f32 %v695, %v695
        %v898 = vadd.f32 %v834, %v835
        %899 = vadd.xlane.f32.xlu0 %v898
        %v900 = vpop.xlane.xlu0 %899
        %v901 = vadd.f32 %v836, %v837
        %902 = vadd.xlane.f32.xlu0 %v901
        %v903 = vpop.xlane.xlu0 %902
        %v904 = vadd.f32 %v838, %v839
        %905 = vadd.xlane.f32.xlu0 %v904
        %v906 = vpop.xlane.xlu0 %905
        %v907 = vadd.f32 %v840, %v841
        %908 = vadd.xlane.f32.xlu0 %v907
        %v909 = vpop.xlane.xlu0 %908
        %v910 = vadd.f32 %v842, %v843
        %911 = vadd.xlane.f32.xlu0 %v910
        %v912 = vpop.xlane.xlu0 %911
        %v913 = vadd.f32 %v844, %v845
        %914 = vadd.xlane.f32.xlu0 %v913
        %v915 = vpop.xlane.xlu0 %914
        %v916 = vadd.f32 %v846, %v847
        %917 = vadd.xlane.f32.xlu0 %v916
        %v918 = vpop.xlane.xlu0 %917
        %v919 = vadd.f32 %v848, %v849
        %920 = vadd.xlane.f32.xlu0 %v919
        %v921 = vpop.xlane.xlu0 %920
        %v922 = vadd.f32 %v850, %v851
        %923 = vadd.xlane.f32.xlu0 %v922
        %v924 = vpop.xlane.xlu0 %923
        %v925 = vadd.f32 %v852, %v853
        %926 = vadd.xlane.f32.xlu0 %v925
        %v927 = vpop.xlane.xlu0 %926
        %v928 = vadd.f32 %v854, %v855
        %929 = vadd.xlane.f32.xlu0 %v928
        %v930 = vpop.xlane.xlu0 %929
        %v931 = vadd.f32 %v856, %v857
        %932 = vadd.xlane.f32.xlu0 %v931
        %v933 = vpop.xlane.xlu0 %932
        %v934 = vadd.f32 %v858, %v859
        %935 = vadd.xlane.f32.xlu0 %v934
        %v936 = vpop.xlane.xlu0 %935
        %v937 = vadd.f32 %v860, %v861
        %938 = vadd.xlane.f32.xlu0 %v937
        %v939 = vpop.xlane.xlu0 %938
        %v940 = vadd.f32 %v862, %v863
        %941 = vadd.xlane.f32.xlu0 %v940
        %v942 = vpop.xlane.xlu0 %941
        %v943 = vadd.f32 %v864, %v865
        %944 = vadd.xlane.f32.xlu0 %v943
        %v945 = vpop.xlane.xlu0 %944
        %v946 = vadd.f32 %v866, %v867
        %947 = vadd.xlane.f32.xlu0 %v946
        %v948 = vpop.xlane.xlu0 %947
        %v949 = vadd.f32 %v868, %v869
        %950 = vadd.xlane.f32.xlu0 %v949
        %v951 = vpop.xlane.xlu0 %950
        %v952 = vadd.f32 %v870, %v871
        %953 = vadd.xlane.f32.xlu0 %v952
        %v954 = vpop.xlane.xlu0 %953
        %v955 = vadd.f32 %v872, %v873
        %956 = vadd.xlane.f32.xlu0 %v955
        %v957 = vpop.xlane.xlu0 %956
        %v958 = vadd.f32 %v874, %v875
        %959 = vadd.xlane.f32.xlu0 %v958
        %v960 = vpop.xlane.xlu0 %959
        %v961 = vadd.f32 %v876, %v877
        %962 = vadd.xlane.f32.xlu0 %v961
        %v963 = vpop.xlane.xlu0 %962
        %v964 = vadd.f32 %v878, %v879
        %965 = vadd.xlane.f32.xlu0 %v964
        %v966 = vpop.xlane.xlu0 %965
        %v967 = vadd.f32 %v880, %v881
        %968 = vadd.xlane.f32.xlu0 %v967
        %v969 = vpop.xlane.xlu0 %968
        %v970 = vadd.f32 %v882, %v883
        %971 = vadd.xlane.f32.xlu0 %v970
        %v972 = vpop.xlane.xlu0 %971
        %v973 = vadd.f32 %v884, %v885
        %974 = vadd.xlane.f32.xlu0 %v973
        %v975 = vpop.xlane.xlu0 %974
        %v976 = vadd.f32 %v886, %v887
        %977 = vadd.xlane.f32.xlu0 %v976
        %v978 = vpop.xlane.xlu0 %977
        %v979 = vadd.f32 %v888, %v889
        %980 = vadd.xlane.f32.xlu0 %v979
        %v981 = vpop.xlane.xlu0 %980
        %v982 = vadd.f32 %v890, %v891
        %983 = vadd.xlane.f32.xlu0 %v982
        %v984 = vpop.xlane.xlu0 %983
        %v985 = vadd.f32 %v892, %v893
        %986 = vadd.xlane.f32.xlu0 %v985
        %v987 = vpop.xlane.xlu0 %986
        %v988 = vadd.f32 %v894, %v895
        %989 = vadd.xlane.f32.xlu0 %v988
        %v990 = vpop.xlane.xlu0 %989
        %v991 = vadd.f32 %v896, %v897
        %992 = vadd.xlane.f32.xlu0 %v991
        %v993 = vpop.xlane.xlu0 %992
        %v994 = vmul.f32 %v900, %v801
        %v995 = vmul.f32 %v903, %v801
        %v996 = vmul.f32 %v906, %v801
        %v997 = vmul.f32 %v909, %v801
        %v998 = vmul.f32 %v912, %v801
        %v999 = vmul.f32 %v915, %v801
        %v1000 = vmul.f32 %v918, %v801
        %v1001 = vmul.f32 %v921, %v801
        %v1002 = vmul.f32 %v924, %v801
        %v1003 = vmul.f32 %v927, %v801
        %v1004 = vmul.f32 %v930, %v801
        %v1005 = vmul.f32 %v933, %v801
        %v1006 = vmul.f32 %v936, %v801
        %v1007 = vmul.f32 %v939, %v801
        %v1008 = vmul.f32 %v942, %v801
        %v1009 = vmul.f32 %v945, %v801
        %v1010 = vmul.f32 %v948, %v801
        %v1011 = vmul.f32 %v951, %v801
        %v1012 = vmul.f32 %v954, %v801
        %v1013 = vmul.f32 %v957, %v801
        %v1014 = vmul.f32 %v960, %v801
        %v1015 = vmul.f32 %v963, %v801
        %v1016 = vmul.f32 %v966, %v801
        %v1017 = vmul.f32 %v969, %v801
        %v1018 = vmul.f32 %v972, %v801
        %v1019 = vmul.f32 %v975, %v801
        %v1020 = vmul.f32 %v978, %v801
        %v1021 = vmul.f32 %v981, %v801
        %v1022 = vmul.f32 %v984, %v801
        %v1023 = vmul.f32 %v987, %v801
        %v1024 = vmul.f32 %v990, %v801
        %v1025 = vmul.f32 %v993, %v801
        %v1026 = vmul.f32 %v802, %v802
        %v1027 = vmul.f32 %v803, %v803
        %v1028 = vmul.f32 %v804, %v804
        %v1029 = vmul.f32 %v805, %v805
        %v1030 = vmul.f32 %v806, %v806
        %v1031 = vmul.f32 %v807, %v807
        %v1032 = vmul.f32 %v808, %v808
        %v1033 = vmul.f32 %v809, %v809
        %v1034 = vmul.f32 %v810, %v810
        %v1035 = vmul.f32 %v811, %v811
        %v1036 = vmul.f32 %v812, %v812
        %v1037 = vmul.f32 %v813, %v813
        %v1038 = vmul.f32 %v814, %v814
        %v1039 = vmul.f32 %v815, %v815
        %v1040 = vmul.f32 %v816, %v816
        %v1041 = vmul.f32 %v817, %v817
        %v1042 = vmul.f32 %v818, %v818
        %v1043 = vmul.f32 %v819, %v819
        %v1044 = vmul.f32 %v820, %v820
        %v1045 = vmul.f32 %v821, %v821
        %v1046 = vmul.f32 %v822, %v822
        %v1047 = vmul.f32 %v823, %v823
        %v1048 = vmul.f32 %v824, %v824
        %v1049 = vmul.f32 %v825, %v825
        %v1050 = vmul.f32 %v826, %v826
        %v1051 = vmul.f32 %v827, %v827
        %v1052 = vmul.f32 %v828, %v828
        %v1053 = vmul.f32 %v829, %v829
        %v1054 = vmul.f32 %v830, %v830
        %v1055 = vmul.f32 %v831, %v831
        %v1056 = vmul.f32 %v832, %v832
        %v1057 = vmul.f32 %v833, %v833
        %v1058 = vsub.f32 %v994, %v1026
        %v1059 = vsub.f32 %v995, %v1027
        %v1060 = vsub.f32 %v996, %v1028
        %v1061 = vsub.f32 %v997, %v1029
        %v1062 = vsub.f32 %v998, %v1030
        %v1063 = vsub.f32 %v999, %v1031
        %v1064 = vsub.f32 %v1000, %v1032
        %v1065 = vsub.f32 %v1001, %v1033
        %v1066 = vsub.f32 %v1002, %v1034
        %v1067 = vsub.f32 %v1003, %v1035
        %v1068 = vsub.f32 %v1004, %v1036
        %v1069 = vsub.f32 %v1005, %v1037
        %v1070 = vsub.f32 %v1006, %v1038
        %v1071 = vsub.f32 %v1007, %v1039
        %v1072 = vsub.f32 %v1008, %v1040
        %v1073 = vsub.f32 %v1009, %v1041
        %v1074 = vsub.f32 %v1010, %v1042
        %v1075 = vsub.f32 %v1011, %v1043
        %v1076 = vsub.f32 %v1012, %v1044
        %v1077 = vsub.f32 %v1013, %v1045
        %v1078 = vsub.f32 %v1014, %v1046
        %v1079 = vsub.f32 %v1015, %v1047
        %v1080 = vsub.f32 %v1016, %v1048
        %v1081 = vsub.f32 %v1017, %v1049
        %v1082 = vsub.f32 %v1018, %v1050
        %v1083 = vsub.f32 %v1019, %v1051
        %v1084 = vsub.f32 %v1020, %v1052
        %v1085 = vsub.f32 %v1021, %v1053
        %v1086 = vsub.f32 %v1022, %v1054
        %v1087 = vsub.f32 %v1023, %v1055
        %v1088 = vsub.f32 %v1024, %v1056
        %v1089 = vsub.f32 %v1025, %v1057
        %v1090 = vmax.f32 %v1058, 0.0
        %v1091 = vmax.f32 %v1059, 0.0
        %v1092 = vmax.f32 %v1060, 0.0
        %v1093 = vmax.f32 %v1061, 0.0
        %v1094 = vmax.f32 %v1062, 0.0
        %v1095 = vmax.f32 %v1063, 0.0
        %v1096 = vmax.f32 %v1064, 0.0
        %v1097 = vmax.f32 %v1065, 0.0
        %v1098 = vmax.f32 %v1066, 0.0
        %v1099 = vmax.f32 %v1067, 0.0
        %v1100 = vmax.f32 %v1068, 0.0
        %v1101 = vmax.f32 %v1069, 0.0
        %v1102 = vmax.f32 %v1070, 0.0
        %v1103 = vmax.f32 %v1071, 0.0
        %v1104 = vmax.f32 %v1072, 0.0
        %v1105 = vmax.f32 %v1073, 0.0
        %v1106 = vmax.f32 %v1074, 0.0
        %v1107 = vmax.f32 %v1075, 0.0
        %v1108 = vmax.f32 %v1076, 0.0
        %v1109 = vmax.f32 %v1077, 0.0
        %v1110 = vmax.f32 %v1078, 0.0
        %v1111 = vmax.f32 %v1079, 0.0
        %v1112 = vmax.f32 %v1080, 0.0
        %v1113 = vmax.f32 %v1081, 0.0
        %v1114 = vmax.f32 %v1082, 0.0
        %v1115 = vmax.f32 %v1083, 0.0
        %v1116 = vmax.f32 %v1084, 0.0
        %v1117 = vmax.f32 %v1085, 0.0
        %v1118 = vmax.f32 %v1086, 0.0
        %v1119 = vmax.f32 %v1087, 0.0
        %v1120 = vmax.f32 %v1088, 0.0
        %v1121 = vmax.f32 %v1089, 0.0
        %v1122 = vadd.f32 %v1090, 1e-05
        %v1123 = vadd.f32 %v1091, 1e-05
        %v1124 = vadd.f32 %v1092, 1e-05
        %v1125 = vadd.f32 %v1093, 1e-05
        %v1126 = vadd.f32 %v1094, 1e-05
        %v1127 = vadd.f32 %v1095, 1e-05
        %v1128 = vadd.f32 %v1096, 1e-05
        %v1129 = vadd.f32 %v1097, 1e-05
        %v1130 = vadd.f32 %v1098, 1e-05
        %v1131 = vadd.f32 %v1099, 1e-05
        %v1132 = vadd.f32 %v1100, 1e-05
        %v1133 = vadd.f32 %v1101, 1e-05
        %v1134 = vadd.f32 %v1102, 1e-05
        %v1135 = vadd.f32 %v1103, 1e-05
        %v1136 = vadd.f32 %v1104, 1e-05
        %v1137 = vadd.f32 %v1105, 1e-05
        %v1138 = vadd.f32 %v1106, 1e-05
        %v1139 = vadd.f32 %v1107, 1e-05
        %v1140 = vadd.f32 %v1108, 1e-05
        %v1141 = vadd.f32 %v1109, 1e-05
        %v1142 = vadd.f32 %v1110, 1e-05
        %v1143 = vadd.f32 %v1111, 1e-05
        %v1144 = vadd.f32 %v1112, 1e-05
        %v1145 = vadd.f32 %v1113, 1e-05
        %v1146 = vadd.f32 %v1114, 1e-05
        %v1147 = vadd.f32 %v1115, 1e-05
        %v1148 = vadd.f32 %v1116, 1e-05
        %v1149 = vadd.f32 %v1117, 1e-05
        %v1150 = vadd.f32 %v1118, 1e-05
        %v1151 = vadd.f32 %v1119, 1e-05
        %v1152 = vadd.f32 %v1120, 1e-05
        %v1153 = vadd.f32 %v1121, 1e-05
        %v1154 = vrsqrt.pop %v1122
        %v1155 = vmul.f32 %v1154, %v1122
        %v1156 = vmul.f32 %v1155, %v1154
        %v1157 = vmul.f32 0.5, %v1156
        %v1158 = vsub.f32 1.5, %v1157
        %v1159 = vmul.f32 %v1154, %v1158
        %vm1160 = vweird.f32 %v1122
        %vm1161 = vweird.f32 %v1154
        %vm1162 = vmor %vm1160, %vm1161
        %v1163 = vsel %vm1162, %v1154, %v1159
        %v1164 = vrsqrt.pop %v1123
        %v1165 = vmul.f32 %v1164, %v1123
        %v1166 = vmul.f32 %v1165, %v1164
        %v1167 = vmul.f32 0.5, %v1166
        %v1168 = vsub.f32 1.5, %v1167
        %v1169 = vmul.f32 %v1164, %v1168
        %vm1170 = vweird.f32 %v1123
        %vm1171 = vweird.f32 %v1164
        %vm1172 = vmor %vm1170, %vm1171
        %v1173 = vsel %vm1172, %v1164, %v1169
        %v1174 = vrsqrt.pop %v1124
        %v1175 = vmul.f32 %v1174, %v1124
        %v1176 = vmul.f32 %v1175, %v1174
        %v1177 = vmul.f32 0.5, %v1176
        %v1178 = vsub.f32 1.5, %v1177
        %v1179 = vmul.f32 %v1174, %v1178
        %vm1180 = vweird.f32 %v1124
        %vm1181 = vweird.f32 %v1174
        %vm1182 = vmor %vm1180, %vm1181
        %v1183 = vsel %vm1182, %v1174, %v1179
        %v1184 = vrsqrt.pop %v1125
        %v1185 = vmul.f32 %v1184, %v1125
        %v1186 = vmul.f32 %v1185, %v1184
        %v1187 = vmul.f32 0.5, %v1186
        %v1188 = vsub.f32 1.5, %v1187
        %v1189 = vmul.f32 %v1184, %v1188
        %vm1190 = vweird.f32 %v1125
        %vm1191 = vweird.f32 %v1184
        %vm1192 = vmor %vm1190, %vm1191
        %v1193 = vsel %vm1192, %v1184, %v1189
        %v1194 = vrsqrt.pop %v1126
        %v1195 = vmul.f32 %v1194, %v1126
        %v1196 = vmul.f32 %v1195, %v1194
        %v1197 = vmul.f32 0.5, %v1196
        %v1198 = vsub.f32 1.5, %v1197
        %v1199 = vmul.f32 %v1194, %v1198
        %vm1200 = vweird.f32 %v1126
        %vm1201 = vweird.f32 %v1194
        %vm1202 = vmor %vm1200, %vm1201
        %v1203 = vsel %vm1202, %v1194, %v1199
        %v1204 = vrsqrt.pop %v1127
        %v1205 = vmul.f32 %v1204, %v1127
        %v1206 = vmul.f32 %v1205, %v1204
        %v1207 = vmul.f32 0.5, %v1206
        %v1208 = vsub.f32 1.5, %v1207
        %v1209 = vmul.f32 %v1204, %v1208
        %vm1210 = vweird.f32 %v1127
        %vm1211 = vweird.f32 %v1204
        %vm1212 = vmor %vm1210, %vm1211
        %v1213 = vsel %vm1212, %v1204, %v1209
        %v1214 = vrsqrt.pop %v1128
        %v1215 = vmul.f32 %v1214, %v1128
        %v1216 = vmul.f32 %v1215, %v1214
        %v1217 = vmul.f32 0.5, %v1216
        %v1218 = vsub.f32 1.5, %v1217
        %v1219 = vmul.f32 %v1214, %v1218
        %vm1220 = vweird.f32 %v1128
        %vm1221 = vweird.f32 %v1214
        %vm1222 = vmor %vm1220, %vm1221
        %v1223 = vsel %vm1222, %v1214, %v1219
        %v1224 = vrsqrt.pop %v1129
        %v1225 = vmul.f32 %v1224, %v1129
        %v1226 = vmul.f32 %v1225, %v1224
        %v1227 = vmul.f32 0.5, %v1226
        %v1228 = vsub.f32 1.5, %v1227
        %v1229 = vmul.f32 %v1224, %v1228
        %vm1230 = vweird.f32 %v1129
        %vm1231 = vweird.f32 %v1224
        %vm1232 = vmor %vm1230, %vm1231
        %v1233 = vsel %vm1232, %v1224, %v1229
        %v1234 = vrsqrt.pop %v1130
        %v1235 = vmul.f32 %v1234, %v1130
        %v1236 = vmul.f32 %v1235, %v1234
        %v1237 = vmul.f32 0.5, %v1236
        %v1238 = vsub.f32 1.5, %v1237
        %v1239 = vmul.f32 %v1234, %v1238
        %vm1240 = vweird.f32 %v1130
        %vm1241 = vweird.f32 %v1234
        %vm1242 = vmor %vm1240, %vm1241
        %v1243 = vsel %vm1242, %v1234, %v1239
        %v1244 = vrsqrt.pop %v1131
        %v1245 = vmul.f32 %v1244, %v1131
        %v1246 = vmul.f32 %v1245, %v1244
        %v1247 = vmul.f32 0.5, %v1246
        %v1248 = vsub.f32 1.5, %v1247
        %v1249 = vmul.f32 %v1244, %v1248
        %vm1250 = vweird.f32 %v1131
        %vm1251 = vweird.f32 %v1244
        %vm1252 = vmor %vm1250, %vm1251
        %v1253 = vsel %vm1252, %v1244, %v1249
        %v1254 = vrsqrt.pop %v1132
        %v1255 = vmul.f32 %v1254, %v1132
        %v1256 = vmul.f32 %v1255, %v1254
        %v1257 = vmul.f32 0.5, %v1256
        %v1258 = vsub.f32 1.5, %v1257
        %v1259 = vmul.f32 %v1254, %v1258
        %vm1260 = vweird.f32 %v1132
        %vm1261 = vweird.f32 %v1254
        %vm1262 = vmor %vm1260, %vm1261
        %v1263 = vsel %vm1262, %v1254, %v1259
        %v1264 = vrsqrt.pop %v1133
        %v1265 = vmul.f32 %v1264, %v1133
        %v1266 = vmul.f32 %v1265, %v1264
        %v1267 = vmul.f32 0.5, %v1266
        %v1268 = vsub.f32 1.5, %v1267
        %v1269 = vmul.f32 %v1264, %v1268
        %vm1270 = vweird.f32 %v1133
        %vm1271 = vweird.f32 %v1264
        %vm1272 = vmor %vm1270, %vm1271
        %v1273 = vsel %vm1272, %v1264, %v1269
        %v1274 = vrsqrt.pop %v1134
        %v1275 = vmul.f32 %v1274, %v1134
        %v1276 = vmul.f32 %v1275, %v1274
        %v1277 = vmul.f32 0.5, %v1276
        %v1278 = vsub.f32 1.5, %v1277
        %v1279 = vmul.f32 %v1274, %v1278
        %vm1280 = vweird.f32 %v1134
        %vm1281 = vweird.f32 %v1274
        %vm1282 = vmor %vm1280, %vm1281
        %v1283 = vsel %vm1282, %v1274, %v1279
        %v1284 = vrsqrt.pop %v1135
        %v1285 = vmul.f32 %v1284, %v1135
        %v1286 = vmul.f32 %v1285, %v1284
        %v1287 = vmul.f32 0.5, %v1286
        %v1288 = vsub.f32 1.5, %v1287
        %v1289 = vmul.f32 %v1284, %v1288
        %vm1290 = vweird.f32 %v1135
        %vm1291 = vweird.f32 %v1284
        %vm1292 = vmor %vm1290, %vm1291
        %v1293 = vsel %vm1292, %v1284, %v1289
        %v1294 = vrsqrt.pop %v1136
        %v1295 = vmul.f32 %v1294, %v1136
        %v1296 = vmul.f32 %v1295, %v1294
        %v1297 = vmul.f32 0.5, %v1296
        %v1298 = vsub.f32 1.5, %v1297
        %v1299 = vmul.f32 %v1294, %v1298
        %vm1300 = vweird.f32 %v1136
        %vm1301 = vweird.f32 %v1294
        %vm1302 = vmor %vm1300, %vm1301
        %v1303 = vsel %vm1302, %v1294, %v1299
        %v1304 = vrsqrt.pop %v1137
        %v1305 = vmul.f32 %v1304, %v1137
        %v1306 = vmul.f32 %v1305, %v1304
        %v1307 = vmul.f32 0.5, %v1306
        %v1308 = vsub.f32 1.5, %v1307
        %v1309 = vmul.f32 %v1304, %v1308
        %vm1310 = vweird.f32 %v1137
        %vm1311 = vweird.f32 %v1304
        %vm1312 = vmor %vm1310, %vm1311
        %v1313 = vsel %vm1312, %v1304, %v1309
        %v1314 = vrsqrt.pop %v1138
        %v1315 = vmul.f32 %v1314, %v1138
        %v1316 = vmul.f32 %v1315, %v1314
        %v1317 = vmul.f32 0.5, %v1316
        %v1318 = vsub.f32 1.5, %v1317
        %v1319 = vmul.f32 %v1314, %v1318
        %vm1320 = vweird.f32 %v1138
        %vm1321 = vweird.f32 %v1314
        %vm1322 = vmor %vm1320, %vm1321
        %v1323 = vsel %vm1322, %v1314, %v1319
        %v1324 = vrsqrt.pop %v1139
        %v1325 = vmul.f32 %v1324, %v1139
        %v1326 = vmul.f32 %v1325, %v1324
        %v1327 = vmul.f32 0.5, %v1326
        %v1328 = vsub.f32 1.5, %v1327
        %v1329 = vmul.f32 %v1324, %v1328
        %vm1330 = vweird.f32 %v1139
        %vm1331 = vweird.f32 %v1324
        %vm1332 = vmor %vm1330, %vm1331
        %v1333 = vsel %vm1332, %v1324, %v1329
        %v1334 = vrsqrt.pop %v1140
        %v1335 = vmul.f32 %v1334, %v1140
        %v1336 = vmul.f32 %v1335, %v1334
        %v1337 = vmul.f32 0.5, %v1336
        %v1338 = vsub.f32 1.5, %v1337
        %v1339 = vmul.f32 %v1334, %v1338
        %vm1340 = vweird.f32 %v1140
        %vm1341 = vweird.f32 %v1334
        %vm1342 = vmor %vm1340, %vm1341
        %v1343 = vsel %vm1342, %v1334, %v1339
        %v1344 = vrsqrt.pop %v1141
        %v1345 = vmul.f32 %v1344, %v1141
        %v1346 = vmul.f32 %v1345, %v1344
        %v1347 = vmul.f32 0.5, %v1346
        %v1348 = vsub.f32 1.5, %v1347
        %v1349 = vmul.f32 %v1344, %v1348
        %vm1350 = vweird.f32 %v1141
        %vm1351 = vweird.f32 %v1344
        %vm1352 = vmor %vm1350, %vm1351
        %v1353 = vsel %vm1352, %v1344, %v1349
        %v1354 = vrsqrt.pop %v1142
        %v1355 = vmul.f32 %v1354, %v1142
        %v1356 = vmul.f32 %v1355, %v1354
        %v1357 = vmul.f32 0.5, %v1356
        %v1358 = vsub.f32 1.5, %v1357
        %v1359 = vmul.f32 %v1354, %v1358
        %vm1360 = vweird.f32 %v1142
        %vm1361 = vweird.f32 %v1354
        %vm1362 = vmor %vm1360, %vm1361
        %v1363 = vsel %vm1362, %v1354, %v1359
        %v1364 = vrsqrt.pop %v1143
        %v1365 = vmul.f32 %v1364, %v1143
        %v1366 = vmul.f32 %v1365, %v1364
        %v1367 = vmul.f32 0.5, %v1366
        %v1368 = vsub.f32 1.5, %v1367
        %v1369 = vmul.f32 %v1364, %v1368
        %vm1370 = vweird.f32 %v1143
        %vm1371 = vweird.f32 %v1364
        %vm1372 = vmor %vm1370, %vm1371
        %v1373 = vsel %vm1372, %v1364, %v1369
        %v1374 = vrsqrt.pop %v1144
        %v1375 = vmul.f32 %v1374, %v1144
        %v1376 = vmul.f32 %v1375, %v1374
        %v1377 = vmul.f32 0.5, %v1376
        %v1378 = vsub.f32 1.5, %v1377
        %v1379 = vmul.f32 %v1374, %v1378
        %vm1380 = vweird.f32 %v1144
        %vm1381 = vweird.f32 %v1374
        %vm1382 = vmor %vm1380, %vm1381
        %v1383 = vsel %vm1382, %v1374, %v1379
        %v1384 = vrsqrt.pop %v1145
        %v1385 = vmul.f32 %v1384, %v1145
        %v1386 = vmul.f32 %v1385, %v1384
        %v1387 = vmul.f32 0.5, %v1386
        %v1388 = vsub.f32 1.5, %v1387
        %v1389 = vmul.f32 %v1384, %v1388
        %vm1390 = vweird.f32 %v1145
        %vm1391 = vweird.f32 %v1384
        %vm1392 = vmor %vm1390, %vm1391
        %v1393 = vsel %vm1392, %v1384, %v1389
        %v1394 = vrsqrt.pop %v1146
        %v1395 = vmul.f32 %v1394, %v1146
        %v1396 = vmul.f32 %v1395, %v1394
        %v1397 = vmul.f32 0.5, %v1396
        %v1398 = vsub.f32 1.5, %v1397
        %v1399 = vmul.f32 %v1394, %v1398
        %vm1400 = vweird.f32 %v1146
        %vm1401 = vweird.f32 %v1394
        %vm1402 = vmor %vm1400, %vm1401
        %v1403 = vsel %vm1402, %v1394, %v1399
        %v1404 = vrsqrt.pop %v1147
        %v1405 = vmul.f32 %v1404, %v1147
        %v1406 = vmul.f32 %v1405, %v1404
        %v1407 = vmul.f32 0.5, %v1406
        %v1408 = vsub.f32 1.5, %v1407
        %v1409 = vmul.f32 %v1404, %v1408
        %vm1410 = vweird.f32 %v1147
        %vm1411 = vweird.f32 %v1404
        %vm1412 = vmor %vm1410, %vm1411
        %v1413 = vsel %vm1412, %v1404, %v1409
        %v1414 = vrsqrt.pop %v1148
        %v1415 = vmul.f32 %v1414, %v1148
        %v1416 = vmul.f32 %v1415, %v1414
        %v1417 = vmul.f32 0.5, %v1416
        %v1418 = vsub.f32 1.5, %v1417
        %v1419 = vmul.f32 %v1414, %v1418
        %vm1420 = vweird.f32 %v1148
        %vm1421 = vweird.f32 %v1414
        %vm1422 = vmor %vm1420, %vm1421
        %v1423 = vsel %vm1422, %v1414, %v1419
        %v1424 = vrsqrt.pop %v1149
        %v1425 = vmul.f32 %v1424, %v1149
        %v1426 = vmul.f32 %v1425, %v1424
        %v1427 = vmul.f32 0.5, %v1426
        %v1428 = vsub.f32 1.5, %v1427
        %v1429 = vmul.f32 %v1424, %v1428
        %vm1430 = vweird.f32 %v1149
        %vm1431 = vweird.f32 %v1424
        %vm1432 = vmor %vm1430, %vm1431
        %v1433 = vsel %vm1432, %v1424, %v1429
        %v1434 = vrsqrt.pop %v1150
        %v1435 = vmul.f32 %v1434, %v1150
        %v1436 = vmul.f32 %v1435, %v1434
        %v1437 = vmul.f32 0.5, %v1436
        %v1438 = vsub.f32 1.5, %v1437
        %v1439 = vmul.f32 %v1434, %v1438
        %vm1440 = vweird.f32 %v1150
        %vm1441 = vweird.f32 %v1434
        %vm1442 = vmor %vm1440, %vm1441
        %v1443 = vsel %vm1442, %v1434, %v1439
        %v1444 = vrsqrt.pop %v1151
        %v1445 = vmul.f32 %v1444, %v1151
        %v1446 = vmul.f32 %v1445, %v1444
        %v1447 = vmul.f32 0.5, %v1446
        %v1448 = vsub.f32 1.5, %v1447
        %v1449 = vmul.f32 %v1444, %v1448
        %vm1450 = vweird.f32 %v1151
        %vm1451 = vweird.f32 %v1444
        %vm1452 = vmor %vm1450, %vm1451
        %v1453 = vsel %vm1452, %v1444, %v1449
        %v1454 = vrsqrt.pop %v1152
        %v1455 = vmul.f32 %v1454, %v1152
        %v1456 = vmul.f32 %v1455, %v1454
        %v1457 = vmul.f32 0.5, %v1456
        %v1458 = vsub.f32 1.5, %v1457
        %v1459 = vmul.f32 %v1454, %v1458
        %vm1460 = vweird.f32 %v1152
        %vm1461 = vweird.f32 %v1454
        %vm1462 = vmor %vm1460, %vm1461
        %v1463 = vsel %vm1462, %v1454, %v1459
        %v1464 = vrsqrt.pop %v1153
        %v1465 = vmul.f32 %v1464, %v1153
        %v1466 = vmul.f32 %v1465, %v1464
        %v1467 = vmul.f32 0.5, %v1466
        %v1468 = vsub.f32 1.5, %v1467
        %v1469 = vmul.f32 %v1464, %v1468
        %vm1470 = vweird.f32 %v1153
        %vm1471 = vweird.f32 %v1464
        %vm1472 = vmor %vm1470, %vm1471
        %v1473 = vsel %vm1472, %v1464, %v1469
        %v1475 = vperm.slane %v697, 0
        %v1476 = vperm.slane %v697, 1
        %v1479 = vmul.f32 %v1163, %v1475
        %v1480 = vmul.f32 %v1163, %v1476
        %v1481 = vmul.f32 %v1173, %v1475
        %v1482 = vmul.f32 %v1173, %v1476
        %v1483 = vmul.f32 %v1183, %v1475
        %v1484 = vmul.f32 %v1183, %v1476
        %v1485 = vmul.f32 %v1193, %v1475
        %v1486 = vmul.f32 %v1193, %v1476
        %v1487 = vmul.f32 %v1203, %v1475
        %v1488 = vmul.f32 %v1203, %v1476
        %v1489 = vmul.f32 %v1213, %v1475
        %v1490 = vmul.f32 %v1213, %v1476
        %v1491 = vmul.f32 %v1223, %v1475
        %v1492 = vmul.f32 %v1223, %v1476
        %v1493 = vmul.f32 %v1233, %v1475
        %v1494 = vmul.f32 %v1233, %v1476
        %v1495 = vmul.f32 %v1243, %v1475
        %v1496 = vmul.f32 %v1243, %v1476
        %v1497 = vmul.f32 %v1253, %v1475
        %v1498 = vmul.f32 %v1253, %v1476
        %v1499 = vmul.f32 %v1263, %v1475
        %v1500 = vmul.f32 %v1263, %v1476
        %v1501 = vmul.f32 %v1273, %v1475
        %v1502 = vmul.f32 %v1273, %v1476
        %v1503 = vmul.f32 %v1283, %v1475
        %v1504 = vmul.f32 %v1283, %v1476
        %v1505 = vmul.f32 %v1293, %v1475
        %v1506 = vmul.f32 %v1293, %v1476
        %v1507 = vmul.f32 %v1303, %v1475
        %v1508 = vmul.f32 %v1303, %v1476
        %v1509 = vmul.f32 %v1313, %v1475
        %v1510 = vmul.f32 %v1313, %v1476
        %v1511 = vmul.f32 %v1323, %v1475
        %v1512 = vmul.f32 %v1323, %v1476
        %v1513 = vmul.f32 %v1333, %v1475
        %v1514 = vmul.f32 %v1333, %v1476
        %v1515 = vmul.f32 %v1343, %v1475
        %v1516 = vmul.f32 %v1343, %v1476
        %v1517 = vmul.f32 %v1353, %v1475
        %v1518 = vmul.f32 %v1353, %v1476
        %v1519 = vmul.f32 %v1363, %v1475
        %v1520 = vmul.f32 %v1363, %v1476
        %v1521 = vmul.f32 %v1373, %v1475
        %v1522 = vmul.f32 %v1373, %v1476
        %v1523 = vmul.f32 %v1383, %v1475
        %v1524 = vmul.f32 %v1383, %v1476
        %v1525 = vmul.f32 %v1393, %v1475
        %v1526 = vmul.f32 %v1393, %v1476
        %v1527 = vmul.f32 %v1403, %v1475
        %v1528 = vmul.f32 %v1403, %v1476
        %v1529 = vmul.f32 %v1413, %v1475
        %v1530 = vmul.f32 %v1413, %v1476
        %v1531 = vmul.f32 %v1423, %v1475
        %v1532 = vmul.f32 %v1423, %v1476
        %v1533 = vmul.f32 %v1433, %v1475
        %v1534 = vmul.f32 %v1433, %v1476
        %v1535 = vmul.f32 %v1443, %v1475
        %v1536 = vmul.f32 %v1443, %v1476
        %v1537 = vmul.f32 %v1453, %v1475
        %v1538 = vmul.f32 %v1453, %v1476
        %v1539 = vmul.f32 %v1463, %v1475
        %v1540 = vmul.f32 %v1463, %v1476
        %v1541 = vmul.f32 %v1473, %v1475
        %v1542 = vmul.f32 %v1473, %v1476
        %v1543 = vsub.f32 %v529, %v802
        %v1544 = vsub.f32 %v618, %v802
        %v1545 = vsub.f32 %v531, %v803
        %v1546 = vsub.f32 %v620, %v803
        %v1547 = vsub.f32 %v534, %v804
        %v1548 = vsub.f32 %v623, %v804
        %v1549 = vsub.f32 %v536, %v805
        %v1550 = vsub.f32 %v625, %v805
        %v1551 = vsub.f32 %v539, %v806
        %v1552 = vsub.f32 %v628, %v806
        %v1553 = vsub.f32 %v541, %v807
        %v1554 = vsub.f32 %v630, %v807
        %v1555 = vsub.f32 %v544, %v808
        %v1556 = vsub.f32 %v633, %v808
        %v1557 = vsub.f32 %v546, %v809
        %v1558 = vsub.f32 %v635, %v809
        %v1559 = vsub.f32 %v549, %v810
        %v1560 = vsub.f32 %v638, %v810
        %v1561 = vsub.f32 %v551, %v811
        %v1562 = vsub.f32 %v640, %v811
        %v1563 = vsub.f32 %v554, %v812
        %v1564 = vsub.f32 %v643, %v812
        %v1565 = vsub.f32 %v556, %v813
        %v1566 = vsub.f32 %v645, %v813
        %v1567 = vsub.f32 %v559, %v814
        %v1568 = vsub.f32 %v648, %v814
        %v1569 = vsub.f32 %v561, %v815
        %v1570 = vsub.f32 %v650, %v815
        %v1571 = vsub.f32 %v564, %v816
        %v1572 = vsub.f32 %v653, %v816
        %v1573 = vsub.f32 %v566, %v817
        %v1574 = vsub.f32 %v655, %v817
        %v1575 = vsub.f32 %v569, %v818
        %v1576 = vsub.f32 %v658, %v818
        %v1577 = vsub.f32 %v571, %v819
        %v1578 = vsub.f32 %v660, %v819
        %v1579 = vsub.f32 %v574, %v820
        %v1580 = vsub.f32 %v663, %v820
        %v1581 = vsub.f32 %v576, %v821
        %v1582 = vsub.f32 %v665, %v821
        %v1583 = vsub.f32 %v579, %v822
        %v1584 = vsub.f32 %v668, %v822
        %v1585 = vsub.f32 %v581, %v823
        %v1586 = vsub.f32 %v670, %v823
        %v1587 = vsub.f32 %v584, %v824
        %v1588 = vsub.f32 %v673, %v824
        %v1589 = vsub.f32 %v586, %v825
        %v1590 = vsub.f32 %v675, %v825
        %v1591 = vsub.f32 %v589, %v826
        %v1592 = vsub.f32 %v678, %v826
        %v1593 = vsub.f32 %v591, %v827
        %v1594 = vsub.f32 %v680, %v827
        %v1595 = vsub.f32 %v594, %v828
        %v1596 = vsub.f32 %v683, %v828
        %v1597 = vsub.f32 %v596, %v829
        %v1598 = vsub.f32 %v685, %v829
        %v1599 = vsub.f32 %v599, %v830
        %v1600 = vsub.f32 %v688, %v830
        %v1601 = vsub.f32 %v601, %v831
        %v1602 = vsub.f32 %v690, %v831
        %v1603 = vsub.f32 %v604, %v832
        %v1604 = vsub.f32 %v693, %v832
        %v1605 = vsub.f32 %v606, %v833
        %v1606 = vsub.f32 %v695, %v833
        %v1607 = vmul.f32 %v1543, %v1479
        %v1608 = vmul.f32 %v1544, %v1480
        %v1609 = vmul.f32 %v1545, %v1481
        %v1610 = vmul.f32 %v1546, %v1482
        %v1611 = vmul.f32 %v1547, %v1483
        %v1612 = vmul.f32 %v1548, %v1484
        %v1613 = vmul.f32 %v1549, %v1485
        %v1614 = vmul.f32 %v1550, %v1486
        %v1615 = vmul.f32 %v1551, %v1487
        %v1616 = vmul.f32 %v1552, %v1488
        %v1617 = vmul.f32 %v1553, %v1489
        %v1618 = vmul.f32 %v1554, %v1490
        %v1619 = vmul.f32 %v1555, %v1491
        %v1620 = vmul.f32 %v1556, %v1492
        %v1621 = vmul.f32 %v1557, %v1493
        %v1622 = vmul.f32 %v1558, %v1494
        %v1623 = vmul.f32 %v1559, %v1495
        %v1624 = vmul.f32 %v1560, %v1496
        %v1625 = vmul.f32 %v1561, %v1497
        %v1626 = vmul.f32 %v1562, %v1498
        %v1627 = vmul.f32 %v1563, %v1499
        %v1628 = vmul.f32 %v1564, %v1500
        %v1629 = vmul.f32 %v1565, %v1501
        %v1630 = vmul.f32 %v1566, %v1502
        %v1631 = vmul.f32 %v1567, %v1503
        %v1632 = vmul.f32 %v1568, %v1504
        %v1633 = vmul.f32 %v1569, %v1505
        %v1634 = vmul.f32 %v1570, %v1506
        %v1635 = vmul.f32 %v1571, %v1507
        %v1636 = vmul.f32 %v1572, %v1508
        %v1637 = vmul.f32 %v1573, %v1509
        %v1638 = vmul.f32 %v1574, %v1510
        %v1639 = vmul.f32 %v1575, %v1511
        %v1640 = vmul.f32 %v1576, %v1512
        %v1641 = vmul.f32 %v1577, %v1513
        %v1642 = vmul.f32 %v1578, %v1514
        %v1643 = vmul.f32 %v1579, %v1515
        %v1644 = vmul.f32 %v1580, %v1516
        %v1645 = vmul.f32 %v1581, %v1517
        %v1646 = vmul.f32 %v1582, %v1518
        %v1647 = vmul.f32 %v1583, %v1519
        %v1648 = vmul.f32 %v1584, %v1520
        %v1649 = vmul.f32 %v1585, %v1521
        %v1650 = vmul.f32 %v1586, %v1522
        %v1651 = vmul.f32 %v1587, %v1523
        %v1652 = vmul.f32 %v1588, %v1524
        %v1653 = vmul.f32 %v1589, %v1525
        %v1654 = vmul.f32 %v1590, %v1526
        %v1655 = vmul.f32 %v1591, %v1527
        %v1656 = vmul.f32 %v1592, %v1528
        %v1657 = vmul.f32 %v1593, %v1529
        %v1658 = vmul.f32 %v1594, %v1530
        %v1659 = vmul.f32 %v1595, %v1531
        %v1660 = vmul.f32 %v1596, %v1532
        %v1661 = vmul.f32 %v1597, %v1533
        %v1662 = vmul.f32 %v1598, %v1534
        %v1663 = vmul.f32 %v1599, %v1535
        %v1664 = vmul.f32 %v1600, %v1536
        %v1665 = vmul.f32 %v1601, %v1537
        %v1666 = vmul.f32 %v1602, %v1538
        %v1667 = vmul.f32 %v1603, %v1539
        %v1668 = vmul.f32 %v1604, %v1540
        %v1669 = vmul.f32 %v1605, %v1541
        %v1670 = vmul.f32 %v1606, %v1542
        %v1672 = vperm.slane %v698, 0
        %v1673 = vperm.slane %v698, 1
        %v1676 = vadd.f32 %v1607, %v1672
        %v1677 = vadd.f32 %v1608, %v1673
        %v1678 = vadd.f32 %v1609, %v1672
        %v1679 = vadd.f32 %v1610, %v1673
        %v1680 = vadd.f32 %v1611, %v1672
        %v1681 = vadd.f32 %v1612, %v1673
        %v1682 = vadd.f32 %v1613, %v1672
        %v1683 = vadd.f32 %v1614, %v1673
        %v1684 = vadd.f32 %v1615, %v1672
        %v1685 = vadd.f32 %v1616, %v1673
        %v1686 = vadd.f32 %v1617, %v1672
        %v1687 = vadd.f32 %v1618, %v1673
        %v1688 = vadd.f32 %v1619, %v1672
        %v1689 = vadd.f32 %v1620, %v1673
        %v1690 = vadd.f32 %v1621, %v1672
        %v1691 = vadd.f32 %v1622, %v1673
        %v1692 = vadd.f32 %v1623, %v1672
        %v1693 = vadd.f32 %v1624, %v1673
        %v1694 = vadd.f32 %v1625, %v1672
        %v1695 = vadd.f32 %v1626, %v1673
        %v1696 = vadd.f32 %v1627, %v1672
        %v1697 = vadd.f32 %v1628, %v1673
        %v1698 = vadd.f32 %v1629, %v1672
        %v1699 = vadd.f32 %v1630, %v1673
        %v1700 = vadd.f32 %v1631, %v1672
        %v1701 = vadd.f32 %v1632, %v1673
        %v1702 = vadd.f32 %v1633, %v1672
        %v1703 = vadd.f32 %v1634, %v1673
        %v1704 = vadd.f32 %v1635, %v1672
        %v1705 = vadd.f32 %v1636, %v1673
        %v1706 = vadd.f32 %v1637, %v1672
        %v1707 = vadd.f32 %v1638, %v1673
        %v1708 = vadd.f32 %v1639, %v1672
        %v1709 = vadd.f32 %v1640, %v1673
        %v1710 = vadd.f32 %v1641, %v1672
        %v1711 = vadd.f32 %v1642, %v1673
        %v1712 = vadd.f32 %v1643, %v1672
        %v1713 = vadd.f32 %v1644, %v1673
        %v1714 = vadd.f32 %v1645, %v1672
        %v1715 = vadd.f32 %v1646, %v1673
        %v1716 = vadd.f32 %v1647, %v1672
        %v1717 = vadd.f32 %v1648, %v1673
        %v1718 = vadd.f32 %v1649, %v1672
        %v1719 = vadd.f32 %v1650, %v1673
        %v1720 = vadd.f32 %v1651, %v1672
        %v1721 = vadd.f32 %v1652, %v1673
        %v1722 = vadd.f32 %v1653, %v1672
        %v1723 = vadd.f32 %v1654, %v1673
        %v1724 = vadd.f32 %v1655, %v1672
        %v1725 = vadd.f32 %v1656, %v1673
        %v1726 = vadd.f32 %v1657, %v1672
        %v1727 = vadd.f32 %v1658, %v1673
        %v1728 = vadd.f32 %v1659, %v1672
        %v1729 = vadd.f32 %v1660, %v1673
        %v1730 = vadd.f32 %v1661, %v1672
        %v1731 = vadd.f32 %v1662, %v1673
        %v1732 = vadd.f32 %v1663, %v1672
        %v1733 = vadd.f32 %v1664, %v1673
        %v1734 = vadd.f32 %v1665, %v1672
        %v1735 = vadd.f32 %v1666, %v1673
        %v1736 = vadd.f32 %v1667, %v1672
        %v1737 = vadd.f32 %v1668, %v1673
        %v1738 = vadd.f32 %v1669, %v1672
        %v1739 = vadd.f32 %v1670, %v1673
        %v1740 = vmax.f32 %v1676, 0.0
        %v1741 = vmax.f32 %v1677, 0.0
        %v1742 = vmax.f32 %v1678, 0.0
        %v1743 = vmax.f32 %v1679, 0.0
        %v1744 = vmax.f32 %v1680, 0.0
        %v1745 = vmax.f32 %v1681, 0.0
        %v1746 = vmax.f32 %v1682, 0.0
        %v1747 = vmax.f32 %v1683, 0.0
        %v1748 = vmax.f32 %v1684, 0.0
        %v1749 = vmax.f32 %v1685, 0.0
        %v1750 = vmax.f32 %v1686, 0.0
        %v1751 = vmax.f32 %v1687, 0.0
        %v1752 = vmax.f32 %v1688, 0.0
        %v1753 = vmax.f32 %v1689, 0.0
        %v1754 = vmax.f32 %v1690, 0.0
        %v1755 = vmax.f32 %v1691, 0.0
        %v1756 = vmax.f32 %v1692, 0.0
        %v1757 = vmax.f32 %v1693, 0.0
        %v1758 = vmax.f32 %v1694, 0.0
        %v1759 = vmax.f32 %v1695, 0.0
        %v1760 = vmax.f32 %v1696, 0.0
        %v1761 = vmax.f32 %v1697, 0.0
        %v1762 = vmax.f32 %v1698, 0.0
        %v1763 = vmax.f32 %v1699, 0.0
        %v1764 = vmax.f32 %v1700, 0.0
        %v1765 = vmax.f32 %v1701, 0.0
        %v1766 = vmax.f32 %v1702, 0.0
        %v1767 = vmax.f32 %v1703, 0.0
        %v1768 = vmax.f32 %v1704, 0.0
        %v1769 = vmax.f32 %v1705, 0.0
        %v1770 = vmax.f32 %v1706, 0.0
        %v1771 = vmax.f32 %v1707, 0.0
        %v1772 = vmax.f32 %v1708, 0.0
        %v1773 = vmax.f32 %v1709, 0.0
        %v1774 = vmax.f32 %v1710, 0.0
        %v1775 = vmax.f32 %v1711, 0.0
        %v1776 = vmax.f32 %v1712, 0.0
        %v1777 = vmax.f32 %v1713, 0.0
        %v1778 = vmax.f32 %v1714, 0.0
        %v1779 = vmax.f32 %v1715, 0.0
        %v1780 = vmax.f32 %v1716, 0.0
        %v1781 = vmax.f32 %v1717, 0.0
        %v1782 = vmax.f32 %v1718, 0.0
        %v1783 = vmax.f32 %v1719, 0.0
        %v1784 = vmax.f32 %v1720, 0.0
        %v1785 = vmax.f32 %v1721, 0.0
        %v1786 = vmax.f32 %v1722, 0.0
        %v1787 = vmax.f32 %v1723, 0.0
        %v1788 = vmax.f32 %v1724, 0.0
        %v1789 = vmax.f32 %v1725, 0.0
        %v1790 = vmax.f32 %v1726, 0.0
        %v1791 = vmax.f32 %v1727, 0.0
        %v1792 = vmax.f32 %v1728, 0.0
        %v1793 = vmax.f32 %v1729, 0.0
        %v1794 = vmax.f32 %v1730, 0.0
        %v1795 = vmax.f32 %v1731, 0.0
        %v1796 = vmax.f32 %v1732, 0.0
        %v1797 = vmax.f32 %v1733, 0.0
        %v1798 = vmax.f32 %v1734, 0.0
        %v1799 = vmax.f32 %v1735, 0.0
        %v1800 = vmax.f32 %v1736, 0.0
        %v1801 = vmax.f32 %v1737, 0.0
        %v1802 = vmax.f32 %v1738, 0.0
        %v1803 = vmax.f32 %v1739, 0.0
        %v1804 = vpack.c.bf16 %v1742, %v1740
        %v1805 = vpack.c.bf16 %v1743, %v1741
        %v1806 = vpack.c.bf16 %v1746, %v1744
        %v1807 = vpack.c.bf16 %v1747, %v1745
        %v1808 = vpack.c.bf16 %v1750, %v1748
        %v1809 = vpack.c.bf16 %v1751, %v1749
        %v1810 = vpack.c.bf16 %v1754, %v1752
        %v1811 = vpack.c.bf16 %v1755, %v1753
        %v1812 = vpack.c.bf16 %v1758, %v1756
        %v1813 = vpack.c.bf16 %v1759, %v1757
        %v1814 = vpack.c.bf16 %v1762, %v1760
        %v1815 = vpack.c.bf16 %v1763, %v1761
        %v1816 = vpack.c.bf16 %v1766, %v1764
        %v1817 = vpack.c.bf16 %v1767, %v1765
        %v1818 = vpack.c.bf16 %v1770, %v1768
        %v1819 = vpack.c.bf16 %v1771, %v1769
        %v1820 = vpack.c.bf16 %v1774, %v1772
        %v1821 = vpack.c.bf16 %v1775, %v1773
        %v1822 = vpack.c.bf16 %v1778, %v1776
        %v1823 = vpack.c.bf16 %v1779, %v1777
        %v1824 = vpack.c.bf16 %v1782, %v1780
        %v1825 = vpack.c.bf16 %v1783, %v1781
        %v1826 = vpack.c.bf16 %v1786, %v1784
        %v1827 = vpack.c.bf16 %v1787, %v1785
        %v1828 = vpack.c.bf16 %v1790, %v1788
        %v1829 = vpack.c.bf16 %v1791, %v1789
        %v1830 = vpack.c.bf16 %v1794, %v1792
        %v1831 = vpack.c.bf16 %v1795, %v1793
        %v1832 = vpack.c.bf16 %v1798, %v1796
        %v1833 = vpack.c.bf16 %v1799, %v1797
        %v1834 = vpack.c.bf16 %v1802, %v1800
        %v1835 = vpack.c.bf16 %v1803, %v1801
        %v1836 = vld [vmem:[#allocation8] sm:$0xf]
        %v1837 = vld [vmem:[#allocation8 + $0x4] sm:$0xf]
        %v1838 = vld [vmem:[#allocation8 + $0x8] sm:$0xf]
        %v1839 = vld [vmem:[#allocation8 + $0xc] sm:$0xf]
        %v1840 = vld [vmem:[#allocation8 + $0x10] sm:$0xf]
        %v1841 = vld [vmem:[#allocation8 + $0x14] sm:$0xf]
        %v1842 = vld [vmem:[#allocation8 + $0x18] sm:$0xf]
        %v1843 = vld [vmem:[#allocation8 + $0x1c] sm:$0xf]
        %v1844 = vld [vmem:[#allocation8 + $0x20] sm:$0xf]
        %v1845 = vld [vmem:[#allocation8 + $0x24] sm:$0xf]
        %v1846 = vld [vmem:[#allocation8 + $0x28] sm:$0xf]
        %v1847 = vld [vmem:[#allocation8 + $0x2c] sm:$0xf]
        %v1848 = vld [vmem:[#allocation8 + $0x30] sm:$0xf]
        %v1849 = vld [vmem:[#allocation8 + $0x34] sm:$0xf]
        %v1850 = vld [vmem:[#allocation8 + $0x38] sm:$0xf]
        %v1851 = vld [vmem:[#allocation8 + $0x3c] sm:$0xf]
        %v1852 = vld [vmem:[#allocation8 + $0x40] sm:$0xf]
        %v1853 = vld [vmem:[#allocation8 + $0x44] sm:$0xf]
        %v1854 = vld [vmem:[#allocation8 + $0x48] sm:$0xf]
        %v1855 = vld [vmem:[#allocation8 + $0x4c] sm:$0xf]
        %v1856 = vld [vmem:[#allocation8 + $0x50] sm:$0xf]
        %v1857 = vld [vmem:[#allocation8 + $0x54] sm:$0xf]
        %v1858 = vld [vmem:[#allocation8 + $0x58] sm:$0xf]
        %v1859 = vld [vmem:[#allocation8 + $0x5c] sm:$0xf]
        %v1860 = vld [vmem:[#allocation8 + $0x60] sm:$0xf]
        %v1861 = vld [vmem:[#allocation8 + $0x64] sm:$0xf]
        %v1862 = vld [vmem:[#allocation8 + $0x68] sm:$0xf]
        %v1863 = vld [vmem:[#allocation8 + $0x6c] sm:$0xf]
        %v1864 = vld [vmem:[#allocation8 + $0x70] sm:$0xf]
        %v1865 = vld [vmem:[#allocation8 + $0x74] sm:$0xf]
        %v1866 = vld [vmem:[#allocation8 + $0x78] sm:$0xf]
        %v1867 = vld [vmem:[#allocation8 + $0x7c] sm:$0xf]
        %v1900 = vunpack.c.l.b16 %v1836
        %v1901 = vunpack.c.l.b16 %v1837
        %v1902 = vunpack.c.l.b16 %v1838
        %v1903 = vunpack.c.l.b16 %v1839
        %v1904 = vunpack.c.l.b16 %v1840
        %v1905 = vunpack.c.l.b16 %v1841
        %v1906 = vunpack.c.l.b16 %v1842
        %v1907 = vunpack.c.l.b16 %v1843
        %v1908 = vunpack.c.l.b16 %v1844
        %v1909 = vunpack.c.l.b16 %v1845
        %v1910 = vunpack.c.l.b16 %v1846
        %v1911 = vunpack.c.l.b16 %v1847
        %v1912 = vunpack.c.l.b16 %v1848
        %v1913 = vunpack.c.l.b16 %v1849
        %v1914 = vunpack.c.l.b16 %v1850
        %v1915 = vunpack.c.l.b16 %v1851
        %v1916 = vunpack.c.l.b16 %v1852
        %v1917 = vunpack.c.l.b16 %v1853
        %v1918 = vunpack.c.l.b16 %v1854
        %v1919 = vunpack.c.l.b16 %v1855
        %v1920 = vunpack.c.l.b16 %v1856
        %v1921 = vunpack.c.l.b16 %v1857
        %v1922 = vunpack.c.l.b16 %v1858
        %v1923 = vunpack.c.l.b16 %v1859
        %v1924 = vunpack.c.l.b16 %v1860
        %v1925 = vunpack.c.l.b16 %v1861
        %v1926 = vunpack.c.l.b16 %v1862
        %v1927 = vunpack.c.l.b16 %v1863
        %v1928 = vunpack.c.l.b16 %v1864
        %v1929 = vunpack.c.l.b16 %v1865
        %v1930 = vunpack.c.l.b16 %v1866
        %v1931 = vunpack.c.l.b16 %v1867
        %v1932 = vpack.c.b16 %v1901, %v1900
        %v1933 = vpack.c.b16 %v1903, %v1902
        %v1934 = vpack.c.b16 %v1905, %v1904
        %v1935 = vpack.c.b16 %v1907, %v1906
        %v1936 = vpack.c.b16 %v1909, %v1908
        %v1937 = vpack.c.b16 %v1911, %v1910
        %v1938 = vpack.c.b16 %v1913, %v1912
        %v1939 = vpack.c.b16 %v1915, %v1914
        %v1940 = vpack.c.b16 %v1917, %v1916
        %v1941 = vpack.c.b16 %v1919, %v1918
        %v1942 = vpack.c.b16 %v1921, %v1920
        %v1943 = vpack.c.b16 %v1923, %v1922
        %v1944 = vpack.c.b16 %v1925, %v1924
        %v1945 = vpack.c.b16 %v1927, %v1926
        %v1946 = vpack.c.b16 %v1929, %v1928
        %v1947 = vpack.c.b16 %v1931, %v1930
        %1964 = vmatpush.bf16.msra.mxu0 %v1939
        %1965 = vmatpush.bf16.msra.mxu0 %v1938
        %1966 = vmatpush.bf16.msra.mxu0 %v1937
        %1967 = vmatpush.bf16.msra.mxu0 %v1936
        %1968 = vmatpush.bf16.msra.mxu0 %v1935
        %1969 = vmatpush.bf16.msra.mxu0 %v1934
        %1970 = vmatpush.bf16.msra.mxu0 %v1933
        %1971 = vmatpush.bf16.msra.mxu0 %v1932
        %1972 = vmatmul.bf16.gmra.mxu0 %v1804
        %v1973 = vpop.f32.mrf.mxu0
        %v1974 = vadd.f32 0.0, %v1973
        %v1975 = vpop.f32.mrf.mxu0
        %v1976 = vadd.f32 0.0, %v1975
        %1977 = vmatmul.bf16.gmra.mxu0 %v1806
        %v1978 = vpop.f32.mrf.mxu0
        %v1979 = vadd.f32 0.0, %v1978
        %v1980 = vpop.f32.mrf.mxu0
        %v1981 = vadd.f32 0.0, %v1980
        %1982 = vmatmul.bf16.gmra.mxu0 %v1808
        %v1983 = vpop.f32.mrf.mxu0
        %v1984 = vadd.f32 0.0, %v1983
        %v1985 = vpop.f32.mrf.mxu0
        %v1986 = vadd.f32 0.0, %v1985
        %1987 = vmatmul.bf16.gmra.mxu0 %v1810
        %v1988 = vpop.f32.mrf.mxu0
        %v1989 = vadd.f32 0.0, %v1988
        %v1990 = vpop.f32.mrf.mxu0
        %v1991 = vadd.f32 0.0, %v1990
        %1992 = vmatmul.bf16.gmra.mxu0 %v1812
        %v1993 = vpop.f32.mrf.mxu0
        %v1994 = vadd.f32 0.0, %v1993
        %v1995 = vpop.f32.mrf.mxu0
        %v1996 = vadd.f32 0.0, %v1995
        %1997 = vmatmul.bf16.gmra.mxu0 %v1814
        %v1998 = vpop.f32.mrf.mxu0
        %v1999 = vadd.f32 0.0, %v1998
        %v2000 = vpop.f32.mrf.mxu0
        %v2001 = vadd.f32 0.0, %v2000
        %2002 = vmatmul.bf16.gmra.mxu0 %v1816
        %v2003 = vpop.f32.mrf.mxu0
        %v2004 = vadd.f32 0.0, %v2003
        %v2005 = vpop.f32.mrf.mxu0
        %v2006 = vadd.f32 0.0, %v2005
        %2007 = vmatmul.bf16.gmra.mxu0 %v1818
        %v2008 = vpop.f32.mrf.mxu0
        %v2009 = vadd.f32 0.0, %v2008
        %v2010 = vpop.f32.mrf.mxu0
        %v2011 = vadd.f32 0.0, %v2010
        %2012 = vmatmul.bf16.gmra.mxu0 %v1820
        %v2013 = vpop.f32.mrf.mxu0
        %v2014 = vadd.f32 0.0, %v2013
        %v2015 = vpop.f32.mrf.mxu0
        %v2016 = vadd.f32 0.0, %v2015
        %2017 = vmatmul.bf16.gmra.mxu0 %v1822
        %v2018 = vpop.f32.mrf.mxu0
        %v2019 = vadd.f32 0.0, %v2018
        %v2020 = vpop.f32.mrf.mxu0
        %v2021 = vadd.f32 0.0, %v2020
        %2022 = vmatmul.bf16.gmra.mxu0 %v1824
        %v2023 = vpop.f32.mrf.mxu0
        %v2024 = vadd.f32 0.0, %v2023
        %v2025 = vpop.f32.mrf.mxu0
        %v2026 = vadd.f32 0.0, %v2025
        %2027 = vmatmul.bf16.gmra.mxu0 %v1826
        %v2028 = vpop.f32.mrf.mxu0
        %v2029 = vadd.f32 0.0, %v2028
        %v2030 = vpop.f32.mrf.mxu0
        %v2031 = vadd.f32 0.0, %v2030
        %2032 = vmatmul.bf16.gmra.mxu0 %v1828
        %v2033 = vpop.f32.mrf.mxu0
        %v2034 = vadd.f32 0.0, %v2033
        %v2035 = vpop.f32.mrf.mxu0
        %v2036 = vadd.f32 0.0, %v2035
        %2037 = vmatmul.bf16.gmra.mxu0 %v1830
        %v2038 = vpop.f32.mrf.mxu0
        %v2039 = vadd.f32 0.0, %v2038
        %v2040 = vpop.f32.mrf.mxu0
        %v2041 = vadd.f32 0.0, %v2040
        %2042 = vmatmul.bf16.gmra.mxu0 %v1832
        %v2043 = vpop.f32.mrf.mxu0
        %v2044 = vadd.f32 0.0, %v2043
        %v2045 = vpop.f32.mrf.mxu0
        %v2046 = vadd.f32 0.0, %v2045
        %2047 = vmatmul.bf16.gmra.mxu0 %v1834
        %v2048 = vpop.f32.mrf.mxu0
        %v2049 = vadd.f32 0.0, %v2048
        %v2050 = vpop.f32.mrf.mxu0
        %v2051 = vadd.f32 0.0, %v2050
        %2052 = vdwg.mxu0
        %2053 = vmatpush.bf16.msra.mxu0 %v1947
        %2054 = vmatpush.bf16.msra.mxu0 %v1946
        %2055 = vmatpush.bf16.msra.mxu0 %v1945
        %2056 = vmatpush.bf16.msra.mxu0 %v1944
        %2057 = vmatpush.bf16.msra.mxu0 %v1943
        %2058 = vmatpush.bf16.msra.mxu0 %v1942
        %2059 = vmatpush.bf16.msra.mxu0 %v1941
        %2060 = vmatpush.bf16.msra.mxu0 %v1940
        %2061 = vmatmul.bf16.gmra.mxu0 %v1805
        %v2062 = vpop.f32.mrf.mxu0
        %v2063 = vadd.f32 %v1974, %v2062
        %v2064 = vpop.f32.mrf.mxu0
        %v2065 = vadd.f32 %v1976, %v2064
        %2066 = vmatmul.bf16.gmra.mxu0 %v1807
        %v2067 = vpop.f32.mrf.mxu0
        %v2068 = vadd.f32 %v1979, %v2067
        %v2069 = vpop.f32.mrf.mxu0
        %v2070 = vadd.f32 %v1981, %v2069
        %2071 = vmatmul.bf16.gmra.mxu0 %v1809
        %v2072 = vpop.f32.mrf.mxu0
        %v2073 = vadd.f32 %v1984, %v2072
        %v2074 = vpop.f32.mrf.mxu0
        %v2075 = vadd.f32 %v1986, %v2074
        %2076 = vmatmul.bf16.gmra.mxu0 %v1811
        %v2077 = vpop.f32.mrf.mxu0
        %v2078 = vadd.f32 %v1989, %v2077
        %v2079 = vpop.f32.mrf.mxu0
        %v2080 = vadd.f32 %v1991, %v2079
        %2081 = vmatmul.bf16.gmra.mxu0 %v1813
        %v2082 = vpop.f32.mrf.mxu0
        %v2083 = vadd.f32 %v1994, %v2082
        %v2084 = vpop.f32.mrf.mxu0
        %v2085 = vadd.f32 %v1996, %v2084
        %2086 = vmatmul.bf16.gmra.mxu0 %v1815
        %v2087 = vpop.f32.mrf.mxu0
        %v2088 = vadd.f32 %v1999, %v2087
        %v2089 = vpop.f32.mrf.mxu0
        %v2090 = vadd.f32 %v2001, %v2089
        %2091 = vmatmul.bf16.gmra.mxu0 %v1817
        %v2092 = vpop.f32.mrf.mxu0
        %v2093 = vadd.f32 %v2004, %v2092
        %v2094 = vpop.f32.mrf.mxu0
        %v2095 = vadd.f32 %v2006, %v2094
        %2096 = vmatmul.bf16.gmra.mxu0 %v1819
        %v2097 = vpop.f32.mrf.mxu0
        %v2098 = vadd.f32 %v2009, %v2097
        %v2099 = vpop.f32.mrf.mxu0
        %v2100 = vadd.f32 %v2011, %v2099
        %2101 = vmatmul.bf16.gmra.mxu0 %v1821
        %v2102 = vpop.f32.mrf.mxu0
        %v2103 = vadd.f32 %v2014, %v2102
        %v2104 = vpop.f32.mrf.mxu0
        %v2105 = vadd.f32 %v2016, %v2104
        %2106 = vmatmul.bf16.gmra.mxu0 %v1823
        %v2107 = vpop.f32.mrf.mxu0
        %v2108 = vadd.f32 %v2019, %v2107
        %v2109 = vpop.f32.mrf.mxu0
        %v2110 = vadd.f32 %v2021, %v2109
        %2111 = vmatmul.bf16.gmra.mxu0 %v1825
        %v2112 = vpop.f32.mrf.mxu0
        %v2113 = vadd.f32 %v2024, %v2112
        %v2114 = vpop.f32.mrf.mxu0
        %v2115 = vadd.f32 %v2026, %v2114
        %2116 = vmatmul.bf16.gmra.mxu0 %v1827
        %v2117 = vpop.f32.mrf.mxu0
        %v2118 = vadd.f32 %v2029, %v2117
        %v2119 = vpop.f32.mrf.mxu0
        %v2120 = vadd.f32 %v2031, %v2119
        %2121 = vmatmul.bf16.gmra.mxu0 %v1829
        %v2122 = vpop.f32.mrf.mxu0
        %v2123 = vadd.f32 %v2034, %v2122
        %v2124 = vpop.f32.mrf.mxu0
        %v2125 = vadd.f32 %v2036, %v2124
        %2126 = vmatmul.bf16.gmra.mxu0 %v1831
        %v2127 = vpop.f32.mrf.mxu0
        %v2128 = vadd.f32 %v2039, %v2127
        %v2129 = vpop.f32.mrf.mxu0
        %v2130 = vadd.f32 %v2041, %v2129
        %2131 = vmatmul.bf16.gmra.mxu0 %v1833
        %v2132 = vpop.f32.mrf.mxu0
        %v2133 = vadd.f32 %v2044, %v2132
        %v2134 = vpop.f32.mrf.mxu0
        %v2135 = vadd.f32 %v2046, %v2134
        %2136 = vmatmul.bf16.gmra.mxu0 %v1835
        %v2137 = vpop.f32.mrf.mxu0
        %v2138 = vadd.f32 %v2049, %v2137
        %v2139 = vpop.f32.mrf.mxu0
        %v2140 = vadd.f32 %v2051, %v2139
        %2141 = vdwg.mxu0
        %v2142 = vpack.c.bf16 %v2063, %v2063
        %v2143 = vpack.c.bf16 %v2065, %v2065
        %v2144 = vpack.c.bf16 %v2068, %v2068
        %v2145 = vpack.c.bf16 %v2070, %v2070
        %v2146 = vpack.c.bf16 %v2073, %v2073
        %v2147 = vpack.c.bf16 %v2075, %v2075
        %v2148 = vpack.c.bf16 %v2078, %v2078
        %v2149 = vpack.c.bf16 %v2080, %v2080
        %v2150 = vpack.c.bf16 %v2083, %v2083
        %v2151 = vpack.c.bf16 %v2085, %v2085
        %v2152 = vpack.c.bf16 %v2088, %v2088
        %v2153 = vpack.c.bf16 %v2090, %v2090
        %v2154 = vpack.c.bf16 %v2093, %v2093
        %v2155 = vpack.c.bf16 %v2095, %v2095
        %v2156 = vpack.c.bf16 %v2098, %v2098
        %v2157 = vpack.c.bf16 %v2100, %v2100
        %v2158 = vpack.c.bf16 %v2103, %v2103
        %v2159 = vpack.c.bf16 %v2105, %v2105
        %v2160 = vpack.c.bf16 %v2108, %v2108
        %v2161 = vpack.c.bf16 %v2110, %v2110
        %v2162 = vpack.c.bf16 %v2113, %v2113
        %v2163 = vpack.c.bf16 %v2115, %v2115
        %v2164 = vpack.c.bf16 %v2118, %v2118
        %v2165 = vpack.c.bf16 %v2120, %v2120
        %v2166 = vpack.c.bf16 %v2123, %v2123
        %v2167 = vpack.c.bf16 %v2125, %v2125
        %v2168 = vpack.c.bf16 %v2128, %v2128
        %v2169 = vpack.c.bf16 %v2130, %v2130
        %v2170 = vpack.c.bf16 %v2133, %v2133
        %v2171 = vpack.c.bf16 %v2135, %v2135
        %v2172 = vpack.c.bf16 %v2138, %v2138
        %v2173 = vpack.c.bf16 %v2140, %v2140
        %2174 = vst [vmem:[%s292] sm:$0xf] %v2142
        %2175 = vst [vmem:[%s292 + $0x4] sm:$0xf] %v2143
        %2176 = vst [vmem:[%s292 + $0x8] sm:$0xf] %v2144
        %2177 = vst [vmem:[%s292 + $0xc] sm:$0xf] %v2145
        %2178 = vst [vmem:[%s292 + $0x10] sm:$0xf] %v2146
        %2179 = vst [vmem:[%s292 + $0x14] sm:$0xf] %v2147
        %2180 = vst [vmem:[%s292 + $0x18] sm:$0xf] %v2148
        %2181 = vst [vmem:[%s292 + $0x1c] sm:$0xf] %v2149
        %2182 = vst [vmem:[%s292 + $0x20] sm:$0xf] %v2150
        %2183 = vst [vmem:[%s292 + $0x24] sm:$0xf] %v2151
        %2184 = vst [vmem:[%s292 + $0x28] sm:$0xf] %v2152
        %2185 = vst [vmem:[%s292 + $0x2c] sm:$0xf] %v2153
        %2186 = vst [vmem:[%s292 + $0x30] sm:$0xf] %v2154
        %2187 = vst [vmem:[%s292 + $0x34] sm:$0xf] %v2155
        %2188 = vst [vmem:[%s292 + $0x38] sm:$0xf] %v2156
        %2189 = vst [vmem:[%s292 + $0x3c] sm:$0xf] %v2157
        %2190 = vst [vmem:[%s292 + $0x40] sm:$0xf] %v2158
        %2191 = vst [vmem:[%s292 + $0x44] sm:$0xf] %v2159
        %2192 = vst [vmem:[%s292 + $0x48] sm:$0xf] %v2160
        %2193 = vst [vmem:[%s292 + $0x4c] sm:$0xf] %v2161
        %2194 = vst [vmem:[%s292 + $0x50] sm:$0xf] %v2162
        %2195 = vst [vmem:[%s292 + $0x54] sm:$0xf] %v2163
        %2196 = vst [vmem:[%s292 + $0x58] sm:$0xf] %v2164
        %2197 = vst [vmem:[%s292 + $0x5c] sm:$0xf] %v2165
        %2198 = vst [vmem:[%s292 + $0x60] sm:$0xf] %v2166
        %2199 = vst [vmem:[%s292 + $0x64] sm:$0xf] %v2167
        %2200 = vst [vmem:[%s292 + $0x68] sm:$0xf] %v2168
        %2201 = vst [vmem:[%s292 + $0x6c] sm:$0xf] %v2169
        %2202 = vst [vmem:[%s292 + $0x70] sm:$0xf] %v2170
        %2203 = vst [vmem:[%s292 + $0x74] sm:$0xf] %v2171
        %2204 = vst [vmem:[%s292 + $0x78] sm:$0xf] %v2172
        %2205 = vst [vmem:[%s292 + $0x7c] sm:$0xf] %v2173
        %s2206 = sand.u32 %s142, 1
        %s2207 = scalar_lea.sflag [#allocation4], %s2206
        %s2208 = sand.u32 %s142, 1
        %s2209 = smul.addr %s2208, 128
        %s2210 = scalar_lea.vmem [#allocation10], %s2209
        // Predicated region
        $region57: #{tpu_custom_call.1} parent=39 // pred_check
          %p2211 = pneg %p152
        $region58: #{tpu_custom_call.1} parent=39 // pred_check_branch
          %2213 = sbr.rel (%p2211) target = $region60
        $region59: #{tpu_custom_call.1} parent=39 // pred_region
          %s2214 = smul.u32 32, %s24
          %2216 = vsyncadd %s2207, 0
          %s2217 = smul.addr %s2214, 4
          %s2218 = scalar_lea.hbm %s5, %s2217
          %s2219 = sshll.u32 %s2210, 4
          %s2220 = int_to_ptr.vmem [resolvable:$true] %s2219
          %s2221 = sshll.u32 %s2218, 4
          %s2222 = int_to_ptr.hbm [resolvable:$true] %s2221
          %2227 = dma.vmem_to_hbm [thread:$0]  %s2220, 2048, %s2222, %s2207, 64, 64, 4
        $region60: #{tpu_custom_call.1} parent=39 // pred_fallthru
          _
      $region40: #{tpu_custom_call.1} parent=5 // pred_fallthru
        _
      %p2228 = scmp.le.s32.totalorder 2, %s19
      // Predicated region
      $region61: #{tpu_custom_call.1} parent=5 // pred_check
        %p2229 = pneg %p2228
      $region62: #{tpu_custom_call.1} parent=5 // pred_check_branch
        %2231 = sbr.rel (%p2229) target = $region64
      $region63: #{tpu_custom_call.1} parent=5 // pred_region
        %s2232 = ssub.s32 %s19, 2
        // Predicated region
        $region65: #{tpu_custom_call.1} parent=63 // pred_check
          %p2233 = pneg %p158
        $region66: #{tpu_custom_call.1} parent=63 // pred_check_branch
          %2235 = sbr.rel (%p2233) target = $region68
        $region67: #{tpu_custom_call.1} parent=63 // pred_region
          %s2236 = sand.u32 %s143, 1
          %s2237 = scalar_lea.sflag [#allocation4], %s2236
          %s2238 = sand.u32 %s143, 1
          %s2239 = smul.addr %s2238, 128
          %s2240 = scalar_lea.vmem [#allocation10], %s2239
          %2242 = dma.done %s2237, 2048
        $region68: #{tpu_custom_call.1} parent=63 // pred_fallthru
          _
      $region64: #{tpu_custom_call.1} parent=5 // pred_fallthru
        _
    $region6: #{tpu_custom_call.1} parent=1 // loop_footer
      %s23 = sadd.s32 1, %s19
    $region7: #{tpu_custom_call.1} parent=1 // loop_footer_branch
      %18 = sbr.rel target = $region3
    $region8: #{tpu_custom_call.1} parent=1 // loop_exit
      _
    %2243 = vsyncpa [#allocation3], 1
    %s2244 = scalar_lea.sflag [#allocation3], 1
    %2245 = vsyncpa %s2244, 1
    %2246 = vsyncpa [#allocation6], 1
    %2247 = vsyncpa [#allocation9], 1
    %2248 = vsyncpa [#allocation4], 1
    %s2249 = scalar_lea.sflag [#allocation4], 1
    %2250 = vsyncpa %s2249, 1

</llo_original>
